<compile_context>
chip_gen: v7x
topology: tpu7x:2x2x1
jax: 0.10.0
libtpu: 0.0.40
codegen_flags: <defaults>
</compile_context>

<pallas_src>
import functools
import math

import jax
import jax.numpy as jnp
from jax import lax
from jax.experimental import pallas as pl
from jax.experimental.pallas import tpu as pltpu

_MASK_VALUE = -1e30  # large negative finite value (avoids -inf - -inf NaNs)


# ----------------------------------------------------------------------------
# Kernel 1: tiled fused linear  o = x @ w + b
# ----------------------------------------------------------------------------
def _linear_kernel(x_ref, w_ref, b_ref, o_ref, acc_ref, *, mxu_dtype):
    k = pl.program_id(2)

    @pl.when(k == 0)
    def _():
        acc_ref[...] = jnp.zeros(acc_ref.shape, acc_ref.dtype)

    acc_ref[...] += jnp.dot(
        x_ref[...].astype(mxu_dtype),
        w_ref[...].astype(mxu_dtype),
        preferred_element_type=jnp.float32,
    )

    @pl.when(k == pl.num_programs(2) - 1)
    def _():
        o_ref[...] = (acc_ref[...] + b_ref[...].astype(jnp.float32)).astype(o_ref.dtype)


def _pick_tile(dim, preferred):
    """Largest tile <= preferred that divides dim (full dim if it already fits)."""
    if dim <= preferred:
        return dim
    t = preferred
    while dim % t != 0 and t > 8:
        t //= 2
    assert dim % t == 0, f"cannot tile dim {dim} with preferred {preferred}"
    return t


def pallas_linear(x, w, b, *, mxu_dtype=jnp.bfloat16, tm=256, tn=256, tk=512):
    # NOTE: defaults target v6e/v7x (256-multiple tiles, ~a few MiB with double
    # buffering).  On v5e prefer 128-multiples.
    M, K = x.shape
    K2, N = w.shape
    assert K == K2 and b.shape == (N,)
    tm, tn, tk = _pick_tile(M, tm), _pick_tile(N, tn), _pick_tile(K, tk)

    cost = pl.CostEstimate(
        flops=2 * M * N * K,
        transcendentals=0,
        bytes_accessed=int((M * K + K * N + M * N + N) * x.dtype.itemsize),
    )
    kernel = functools.partial(_linear_kernel, mxu_dtype=mxu_dtype)
    return pl.pallas_call(
        kernel,
        out_shape=jax.ShapeDtypeStruct((M, N), x.dtype),
        grid_spec=pltpu.PrefetchScalarGridSpec(
            num_scalar_prefetch=0,
            grid=(M // tm, N // tn, K // tk),
            in_specs=[
                pl.BlockSpec((tm, tk), lambda i, j, k: (i, k)),
                pl.BlockSpec((tk, tn), lambda i, j, k: (k, j)),
                pl.BlockSpec((1, tn), lambda i, j, k: (0, j)),
            ],
            out_specs=pl.BlockSpec((tm, tn), lambda i, j, k: (i, j)),
            scratch_shapes=[pltpu.VMEM((tm, tn), jnp.float32)],
        ),
        compiler_params=pltpu.CompilerParams(
            dimension_semantics=("parallel", "parallel", "arbitrary"),
            vmem_limit_bytes=64 * 1024 * 1024,
        ),
        cost_estimate=cost,
    )(x, w, b.reshape(1, N))


# ----------------------------------------------------------------------------
# Kernel 2: flash-style causal attention reading straight from fused qkv.
#   grid = (B, head_groups, T//block_q, T//block_k), KV axis is the reduction.
#   Each block carries `heads_per_block` heads so its lane width is 128.
# ----------------------------------------------------------------------------
def _flash_attn_kernel(q_ref, k_ref, v_ref, o_ref, m_ref, l_ref, acc_ref, *,
                       heads_per_block, head_dim, block_q, block_k, mxu_dtype):
    qi = pl.program_id(2)
    ki = pl.program_id(3)
    scale = 1.0 / math.sqrt(head_dim)

    @pl.when(ki == 0)
    def _init():
        m_ref[...] = jnp.full(m_ref.shape, _MASK_VALUE, m_ref.dtype)
        l_ref[...] = jnp.zeros(l_ref.shape, l_ref.dtype)
        acc_ref[...] = jnp.zeros(acc_ref.shape, acc_ref.dtype)

    def _update(apply_causal_mask):
        qb = q_ref[0]  # (block_q, heads_per_block * head_dim)
        kb = k_ref[0]  # (block_k, heads_per_block * head_dim)
        vb = v_ref[0]
        for h in range(heads_per_block):
            sl = slice(h * head_dim, (h + 1) * head_dim)
            q = (qb[:, sl] * scale).astype(mxu_dtype)   # fold 1/sqrt(D) into q
            k = kb[:, sl].astype(mxu_dtype)
            v = vb[:, sl].astype(mxu_dtype)
            s = jnp.dot(q, k.T, preferred_element_type=jnp.float32)  # (bq, bk) f32
            if apply_causal_mask:
                # Only the diagonal block needs the iota mask (block_q == block_k,
                # so local row >= local col is exactly the causal condition).
                row = lax.broadcasted_iota(jnp.int32, (block_q, block_k), 0)
                col = lax.broadcasted_iota(jnp.int32, (block_q, block_k), 1)
                s = jnp.where(row >= col, s, _MASK_VALUE)
            m_prev = m_ref[h]                                     # (bq, 1)
            m_new = jnp.maximum(m_prev, jnp.max(s, axis=-1, keepdims=True))
            alpha = jnp.exp(m_prev - m_new)
            p = jnp.exp(s - m_new)                                # f32
            l_ref[h] = alpha * l_ref[h] + jnp.sum(p, axis=-1, keepdims=True)
            acc_ref[h] = alpha * acc_ref[h] + jnp.dot(
                p.astype(mxu_dtype), v, preferred_element_type=jnp.float32)
            m_ref[h] = m_new

    # Fully-masked KV blocks (ki > qi) are skipped entirely (~2x causal saving).
    @pl.when(ki < qi)
    def _off_diagonal():
        _update(apply_causal_mask=False)

    @pl.when(ki == qi)
    def _diagonal():
        _update(apply_causal_mask=True)

    # ki == qi is the last KV block with any unmasked work for this q tile.
    @pl.when(ki == qi)
    def _finalize():
        outs = []
        for h in range(heads_per_block):
            inv_l = pl.reciprocal(l_ref[h], approx=True)  # EUP slot, off the VPU path
            outs.append((acc_ref[h] * inv_l).astype(o_ref.dtype))
        o_ref[0] = jnp.concatenate(outs, axis=-1)         # lane-dense (bq, hb*D) store


def _heads_per_block(n_head, head_dim):
    if head_dim % 128 == 0:
        return 1
    if 128 % head_dim == 0 and n_head % (128 // head_dim) == 0:
        return 128 // head_dim
    # TODO(synk): irregular head_dim -> falls back to non-lane-dense single-head blocks.
    return 1


def pallas_flash_attention(qkv, *, n_head, block_q=128, block_k=128,
                           mxu_dtype=jnp.bfloat16):
    B, T, three_c = qkv.shape
    C = three_c // 3
    assert three_c == 3 * C and C % n_head == 0
    D = C // n_head
    hb = _heads_per_block(n_head, D)
    G = n_head // hb                 # head groups per batch
    hbd = hb * D                     # lane width of every block (128 for D=64)

    block_q = min(block_q, T)
    block_k = min(block_k, T)
    assert block_q == block_k, "causal block skipping assumes square Q/KV tiles"
    assert T % block_q == 0 and (block_q % 8 == 0 or block_q == T)
    nq, nk = T // block_q, T // block_k

    cost = pl.CostEstimate(
        flops=int(2 * B * n_head * T * T * D),        # causal half of QK^T + PV
        transcendentals=int(B * n_head * T * T // 2),  # exp on the causal half
        bytes_accessed=int(4 * B * T * C * qkv.dtype.itemsize),
    )
    kernel = functools.partial(
        _flash_attn_kernel, heads_per_block=hb, head_dim=D,
        block_q=block_q, block_k=block_k, mxu_dtype=mxu_dtype)

    return pl.pallas_call(
        kernel,
        out_shape=jax.ShapeDtypeStruct((B, T, C), qkv.dtype),
        grid_spec=pltpu.PrefetchScalarGridSpec(
            num_scalar_prefetch=0,
            grid=(B, G, nq, nk),
            in_specs=[
                # q / k / v column slabs of the fused (B, T, 3C) qkv activation.
                pl.BlockSpec((1, block_q, hbd), lambda b, g, qi, ki: (b, qi, g)),
                pl.BlockSpec((1, block_k, hbd), lambda b, g, qi, ki: (b, ki, G + g)),
                pl.BlockSpec((1, block_k, hbd), lambda b, g, qi, ki: (b, ki, 2 * G + g)),
            ],
            out_specs=pl.BlockSpec((1, block_q, hbd), lambda b, g, qi, ki: (b, qi, g)),
            scratch_shapes=[
                pltpu.VMEM((hb, block_q, 1), jnp.float32),  # running max
                pltpu.VMEM((hb, block_q, 1), jnp.float32),  # running sum
                pltpu.VMEM((hb, block_q, D), jnp.float32),  # output accumulator
            ],
        ),
        compiler_params=pltpu.CompilerParams(
            dimension_semantics=("parallel", "parallel", "parallel", "arbitrary"),
            vmem_limit_bytes=64 * 1024 * 1024,
        ),
        cost_estimate=cost,
    )(qkv, qkv, qkv)


# ----------------------------------------------------------------------------
# CausalSelfAttention forward: c_attn -> fused-head flash attention -> c_proj
# ----------------------------------------------------------------------------
def causal_self_attention(x, params, n_head, *, mxu_dtype=jnp.bfloat16,
                          block_q=128, block_k=128):
    B, T, C = x.shape
    qkv = pallas_linear(x.reshape(B * T, C), params["w_attn"], params["b_attn"],
                        mxu_dtype=mxu_dtype)
    qkv = qkv.reshape(B, T, 3 * C)
    # Head split / merge is folded into the attention BlockSpecs: no jnp.split,
    # no (B, T, H, D) transposes, output comes back already in (B, T, C).
    y = pallas_flash_attention(qkv, n_head=n_head, block_q=block_q,
                               block_k=block_k, mxu_dtype=mxu_dtype)
    y = pallas_linear(y.reshape(B * T, C), params["w_proj"], params["b_proj"],
                      mxu_dtype=mxu_dtype)
    return y.reshape(B, T, C)


# Pure-JAX reference (f32, highest matmul precision) for validation.
def reference_attention(x, params, n_head):
    B, T, C = x.shape
    D = C // n_head
    hp = lax.Precision.HIGHEST
    qkv = jnp.dot(x, params["w_attn"], precision=hp) + params["b_attn"]
    q, k, v = jnp.split(qkv, 3, axis=2)
    q = q.reshape(B, T, n_head, D).transpose(0, 2, 1, 3)
    k = k.reshape(B, T, n_head, D).transpose(0, 2, 1, 3)
    v = v.reshape(B, T, n_head, D).transpose(0, 2, 1, 3)
    s = jnp.einsum("bhqd,bhkd->bhqk", q, k, precision=hp) / math.sqrt(D)
    mask = jnp.tril(jnp.ones((T, T), dtype=bool))
    s = jnp.where(mask, s, -jnp.inf)
    p = jax.nn.softmax(s, axis=-1)
    y = jnp.einsum("bhqk,bhkd->bhqd", p, v, precision=hp)
    y = y.transpose(0, 2, 1, 3).reshape(B, T, C)
    return jnp.dot(y, params["w_proj"], precision=hp) + params["b_proj"]


if __name__ == "__main__":
    # Small but GPT-2-shaped config: head_dim = 64 (like GPT-2), 4 heads, T = 128.
    # block_q = block_k = 64 so the causal skip / diagonal-mask / off-diagonal
    # paths are all exercised.
    B, T, C, n_head = 2, 128, 256, 4

    key = jax.random.PRNGKey(0)
    kx, k1, k2, k3, k4 = jax.random.split(key, 5)
    x = jax.random.normal(kx, (B, T, C), dtype=jnp.float32)
    params = {
        "w_attn": jax.random.normal(k1, (C, 3 * C), dtype=jnp.float32) * 0.02,
        "b_attn": jax.random.normal(k2, (3 * C,), dtype=jnp.float32) * 0.02,
        "w_proj": jax.random.normal(k3, (C, C), dtype=jnp.float32) * 0.02,
        "b_proj": jax.random.normal(k4, (C,), dtype=jnp.float32) * 0.02,
    }

    y_ref = reference_attention(x, params, n_head)

    # Strict check: f32 MXU operands.
    y_f32 = causal_self_attention(x, params, n_head, mxu_dtype=jnp.float32,
                                  block_q=64, block_k=64)
    y_f32 = jax.block_until_ready(y_f32)
    assert y_f32.shape == (B, T, C)
    assert jnp.allclose(y_f32, y_ref, atol=5e-3, rtol=5e-3), "f32 path mismatch"

    # Production path: bf16 operands on the MXU, f32 accumulation (looser tol).
    y_bf16 = causal_self_attention(x, params, n_head, mxu_dtype=jnp.bfloat16,
                                   block_q=64, block_k=64)
    y_bf16 = jax.block_until_ready(y_bf16)
    assert jnp.allclose(y_bf16, y_ref, atol=3e-2, rtol=3e-2), "bf16 path mismatch"

    print("KERNEL_OK")
</pallas_src>

<mosaic_0001>
module attributes {stable_mosaic.version = 11 : i64} {
  func.func @_linear_kernel(%arg0: i32, %arg1: i32, %arg2: i32, %arg3: memref<256x256xf32, #tpu.memory_space<vmem>>, %arg4: memref<256x256xf32, #tpu.memory_space<vmem>>, %arg5: memref<1x256xf32, #tpu.memory_space<vmem>>, %arg6: memref<256x256xf32, #tpu.memory_space<vmem>>, %arg7: memref<256x256xf32, #tpu.memory_space<vmem>>) attributes {dimension_semantics = [#tpu.dimension_semantics<parallel>, #tpu.dimension_semantics<parallel>, #tpu.dimension_semantics<arbitrary>], iteration_bounds = array<i64: 1, 3, 1>, scalar_prefetch = 0 : i64, scratch_operands = 1 : i64, tpu.core_type = #tpu.core_type<tc>, window_params = [{transform_indices = @transform_0, window_bounds = array<i64: 256, 256>}, {transform_indices = @transform_1, window_bounds = array<i64: 256, 256>}, {transform_indices = @transform_2, window_bounds = array<i64: 1, 256>}, {transform_indices = @transform_3, window_bounds = array<i64: 256, 256>}]} {
    %c0_i32 = arith.constant 0 : i32
    %0 = arith.cmpi eq, %arg2, %c0_i32 : i32
    %1 = arith.extui %0 : i1 to i32
    %c0_i32_0 = arith.constant 0 : i32
    %2 = arith.cmpi ne, %1, %c0_i32_0 : i32
    scf.if %2 {
      %cst_10 = arith.constant 0.000000e+00 : f32
      %12 = vector.broadcast %cst_10 : f32 to vector<256x256xf32>
      %c0_11 = arith.constant 0 : index
      %c0_12 = arith.constant 0 : index
      %13 = vector.load %arg7[%c0_11, %c0_12] : memref<256x256xf32, #tpu.memory_space<vmem>>, vector<256x256xf32>
      tpu.vector_store %arg7[%c0_11, %c0_12], %12 {strides = array<i32>} : memref<256x256xf32, #tpu.memory_space<vmem>>, vector<256x256xf32>,
    } else {
    }
    %c0 = arith.constant 0 : index
    %c0_1 = arith.constant 0 : index
    %3 = vector.load %arg7[%c0, %c0_1] : memref<256x256xf32, #tpu.memory_space<vmem>>, vector<256x256xf32>
    %c0_2 = arith.constant 0 : index
    %c0_3 = arith.constant 0 : index
    %4 = vector.load %arg3[%c0_2, %c0_3] : memref<256x256xf32, #tpu.memory_space<vmem>>, vector<256x256xf32>
    %c0_4 = arith.constant 0 : index
    %c0_5 = arith.constant 0 : index
    %5 = vector.load %arg4[%c0_4, %c0_5] : memref<256x256xf32, #tpu.memory_space<vmem>>, vector<256x256xf32>
    %cst = arith.constant dense<0.000000e+00> : vector<256x256xf32>
    %6 = tpu.matmul %4, %5, %cst {dimension_numbers = #tpu.dot_dimension_numbers<[1], [0], [0], [1], [0, 0, 1, 1], [], []>} : vector<256x256xf32>, vector<256x256xf32>, vector<256x256xf32> -> vector<256x256xf32>
    %7 = arith.addf %3, %6 : vector<256x256xf32>
    %c0_6 = arith.constant 0 : index
    %c0_7 = arith.constant 0 : index
    %8 = vector.load %arg7[%c0_6, %c0_7] : memref<256x256xf32, #tpu.memory_space<vmem>>, vector<256x256xf32>
    tpu.vector_store %arg7[%c0_6, %c0_7], %7 {strides = array<i32>} : memref<256x256xf32, #tpu.memory_space<vmem>>, vector<256x256xf32>,
    %c0_i32_8 = arith.constant 0 : i32
    %9 = arith.cmpi eq, %arg2, %c0_i32_8 : i32
    %10 = arith.extui %9 : i1 to i32
    %c0_i32_9 = arith.constant 0 : i32
    %11 = arith.cmpi ne, %10, %c0_i32_9 : i32
    scf.if %11 {
      %c0_10 = arith.constant 0 : index
      %c0_11 = arith.constant 0 : index
      %12 = vector.load %arg7[%c0_10, %c0_11] : memref<256x256xf32, #tpu.memory_space<vmem>>, vector<256x256xf32>
      %c0_12 = arith.constant 0 : index
      %c0_13 = arith.constant 0 : index
      %13 = vector.load %arg5[%c0_12, %c0_13] : memref<1x256xf32, #tpu.memory_space<vmem>>, vector<1x256xf32>
      %14 = vector.broadcast %13 : vector<1x256xf32> to vector<256x256xf32>
      %15 = arith.addf %12, %14 : vector<256x256xf32>
      %c0_14 = arith.constant 0 : index
      %c0_15 = arith.constant 0 : index
      %16 = vector.load %arg6[%c0_14, %c0_15] : memref<256x256xf32, #tpu.memory_space<vmem>>, vector<256x256xf32>
      tpu.vector_store %arg6[%c0_14, %c0_15], %15 {strides = array<i32>} : memref<256x256xf32, #tpu.memory_space<vmem>>, vector<256x256xf32>,
    } else {
    }
    return
  }
  func.func @transform_0(%arg0: i32, %arg1: i32, %arg2: i32) -> (i32, i32) {
    %c0_i32 = arith.constant 0 : i32
    return %arg0, %arg2 : i32, i32
  }
  func.func @transform_1(%arg0: i32, %arg1: i32, %arg2: i32) -> (i32, i32) {
    %c0_i32 = arith.constant 0 : i32
    return %arg2, %arg1 : i32, i32
  }
  func.func @transform_2(%arg0: i32, %arg1: i32, %arg2: i32) -> (i32, i32) {
    %c0_i32 = arith.constant 0 : i32
    %c0_i32_0 = arith.constant 0 : i32
    return %c0_i32, %arg1 : i32, i32
  }
  func.func @transform_3(%arg0: i32, %arg1: i32, %arg2: i32) -> (i32, i32) {
    %c0_i32 = arith.constant 0 : i32
    return %arg0, %arg1 : i32, i32
  }
}

</mosaic_0001>

<llo_original>
// kernel: tpu_custom_call.1
$region0: #{tpu_custom_call.1}
  #allocation0 [shape = 'u32[]', space=smem, size = 0x4, offset = 0x4, fixed_abs, tag = 'smem constant byte address 0x4 - core index']
  #allocation1 [shape = 'u32[144,128]{1,0:T(1,128)}', space=vmem, size = 0x12000, scoped, tag = 'internal scratch']
  #allocation2 [shape = 'f32[256,256]{1,0:T(8,128)}', space=vmem, size = 0x40000, scoped, tag = 'scratch operand']
  %s0 = inlined_call_operand.hbm [shape: f32[256,256], index: 0, kind: input, shape index: {}]
  %s1 = inlined_call_operand.hbm [shape: f32[256,768], index: 1, kind: input, shape index: {}]
  %s2 = inlined_call_operand.hbm [shape: f32[1,768], index: 2, kind: input, shape index: {}]
  %s3 = inlined_call_operand.hbm [shape: f32[256,768], index: 3, kind: output, shape index: {}]
  %s4 = sld [smem:[#allocation0]]
  $region65: #{tpu_custom_call.1} parent=0
    _
  %s6 = ssub.s32 1, %s4
  %s7 = scalar_select 0, %s6, %s4
  $region1: #{tpu_custom_call.1} parent=0
    #allocation3 [shape = 'u8[262144]{0}', space=vmem, size = 0x40000, scoped, tag = 'input window, operand 0, single buffered']
    #allocation4 [shape = 's32[2]{0}', space=sflag, size = 0x8, scoped, tag = 'scoped memory for tpu_custom_call.1']
    #allocation5 [shape = 's32[2]{0}', space=sflag, size = 0x8, scoped, tag = 'scoped memory for tpu_custom_call.1']
    #allocation6 [shape = 'u8[524288]{0}', space=vmem, size = 0x80000, scoped, tag = 'input window, operand 1']
    #allocation7 [shape = 's32[2]{0}', space=sflag, size = 0x8, scoped, tag = 'scoped memory for tpu_custom_call.1']
    #allocation8 [shape = 'u8[2048]{0}', space=vmem, size = 0x800, scoped, tag = 'input window, operand 2']
    #allocation9 [shape = 'u8[524288]{0}', space=vmem, size = 0x80000, scoped, tag = 'output window, operand 0']
    %8 = vsyncpa [#allocation4], 0
    %9 = vsyncpa [#allocation7], 0
    %s10 = scalar_lea.sflag [#allocation7], 1
    %11 = vsyncpa %s10, 0
    %12 = vsyncpa [#allocation5], 0
    %s13 = scalar_lea.sflag [#allocation5], 1
    %14 = vsyncpa %s13, 0
    loop: start=0, step=1, limit=5
    $region2: #{tpu_custom_call.1} parent=1 // loop_pre_header
      _
    $region3: #{tpu_custom_call.1} parent=1 // loop_header
      %s16 = sphi 0, %s20
      %p17 = scmp.ge.s32.totalorder %s16, 5
      %s23 = sphi 0, %s42
      %s24 = sphi 0, %s38
      %s25 = sphi 0, %s34
      %s26 = sphi 0, %s23
      %s27 = sphi 0, %s24
      %s28 = sphi 0, %s25
      %s29 = sphi 0, %s26
      %s30 = sphi 0, %s27
      %s31 = sphi 0, %s28
      %s47 = sphi 0, %s49
      %s50 = sphi 0, %s47
      %s51 = sphi 0, %s50
      %s67 = sphi 0, %s51
      %s75 = sphi 0, %s77
      %s78 = sphi 0, %s75
      %s79 = sphi 0, %s78
      %s95 = sphi 0, %s79
      %s101 = sphi 0, %s103
      %s104 = sphi 0, %s101
      %s105 = sphi 0, %s104
      %s121 = sphi 0, %s105
      %s129 = sphi 0, %s131
      %s132 = sphi 0, %s129
      %s133 = sphi 0, %s132
      %s149 = sphi 0, %s133
    $region4: #{tpu_custom_call.1} parent=1 // loop_header_branch
      %19 = sbr.rel (%p17) target = $region8
    $region5: #{tpu_custom_call.1} parent=1 // loop_body
      %s21 = ssub.s32 %s16, 1
      %s22 = ssub.s32 %s16, 2
      %s32 = sadd.s32 1, %s25
      %p33 = scmp.ge.s32.totalorder %s32, 1
      %s34 = scalar_select %p33, 0, %s32
      %s35 = sadd.s32 1, %s24
      %s36 = scalar_select %p33, %s35, %s24
      %p37 = scmp.ge.s32.totalorder %s36, 3
      %s38 = scalar_select %p37, 0, %s36
      %s39 = sadd.s32 1, %s23
      %s40 = scalar_select %p37, %s39, %s23
      %p41 = scmp.ge.s32.totalorder %s40, 1
      %s42 = scalar_select %p41, 0, %s40
      %s43 = ssub.s32 %s23, %s42
      %s44 = ssub.s32 %s25, %s34
      %s45 = sor.u32 %s43, %s44
      %p46 = scmp.eq.s32.totalorder %s45, 0
      %s48 = sadd.s32 %s47, 1
      %s49 = scalar_select %p46, %s47, %s48
      %p52 = pneg %p46
      %p53 = scmp.eq.s32.totalorder %s16, 2
      %p54 = por %p52, %p53
      %p55 = scmp.ne.s32.totalorder %s47, %s50
      %p56 = scmp.eq.s32.totalorder %s16, 0
      %p57 = por %p55, %p56
      %p58 = scmp.ne.s32.totalorder %s47, %s50
      %p59 = scmp.eq.s32.totalorder %s21, 2
      %p60 = por %p58, %p59
      %p61 = scmp.ne.s32.totalorder %s50, %s51
      %p62 = scmp.eq.s32.totalorder %s21, 0
      %p63 = por %p61, %p62
      %p64 = scmp.ne.s32.totalorder %s50, %s51
      %p65 = scmp.eq.s32.totalorder %s22, 2
      %p66 = por %p64, %p65
      %p68 = scmp.ne.s32.totalorder %s51, %s67
      %p69 = scmp.eq.s32.totalorder %s22, 0
      %p70 = por %p68, %p69
      %s71 = ssub.s32 %s25, %s34
      %s72 = ssub.s32 %s24, %s38
      %s73 = sor.u32 %s71, %s72
      %p74 = scmp.eq.s32.totalorder %s73, 0
      %s76 = sadd.s32 %s75, 1
      %s77 = scalar_select %p74, %s75, %s76
      %p80 = pneg %p74
      %p81 = scmp.eq.s32.totalorder %s16, 2
      %p82 = por %p80, %p81
      %p83 = scmp.ne.s32.totalorder %s75, %s78
      %p84 = scmp.eq.s32.totalorder %s16, 0
      %p85 = por %p83, %p84
      %p86 = scmp.ne.s32.totalorder %s75, %s78
      %p87 = scmp.eq.s32.totalorder %s21, 2
      %p88 = por %p86, %p87
      %p89 = scmp.ne.s32.totalorder %s78, %s79
      %p90 = scmp.eq.s32.totalorder %s21, 0
      %p91 = por %p89, %p90
      %p92 = scmp.ne.s32.totalorder %s78, %s79
      %p93 = scmp.eq.s32.totalorder %s22, 2
      %p94 = por %p92, %p93
      %p96 = scmp.ne.s32.totalorder %s79, %s95
      %p97 = scmp.eq.s32.totalorder %s22, 0
      %p98 = por %p96, %p97
      %s99 = ssub.s32 %s24, %s38
      %p100 = scmp.eq.s32.totalorder %s99, 0
      %s102 = sadd.s32 %s101, 1
      %s103 = scalar_select %p100, %s101, %s102
      %p106 = pneg %p100
      %p107 = scmp.eq.s32.totalorder %s16, 2
      %p108 = por %p106, %p107
      %p109 = scmp.ne.s32.totalorder %s101, %s104
      %p110 = scmp.eq.s32.totalorder %s16, 0
      %p111 = por %p109, %p110
      %p112 = scmp.ne.s32.totalorder %s101, %s104
      %p113 = scmp.eq.s32.totalorder %s21, 2
      %p114 = por %p112, %p113
      %p115 = scmp.ne.s32.totalorder %s104, %s105
      %p116 = scmp.eq.s32.totalorder %s21, 0
      %p117 = por %p115, %p116
      %p118 = scmp.ne.s32.totalorder %s104, %s105
      %p119 = scmp.eq.s32.totalorder %s22, 2
      %p120 = por %p118, %p119
      %p122 = scmp.ne.s32.totalorder %s105, %s121
      %p123 = scmp.eq.s32.totalorder %s22, 0
      %p124 = por %p122, %p123
      %s125 = ssub.s32 %s23, %s42
      %s126 = ssub.s32 %s24, %s38
      %s127 = sor.u32 %s125, %s126
      %p128 = scmp.eq.s32.totalorder %s127, 0
      %s130 = sadd.s32 %s129, 1
      %s131 = scalar_select %p128, %s129, %s130
      %p134 = pneg %p128
      %p135 = scmp.eq.s32.totalorder %s16, 2
      %p136 = por %p134, %p135
      %p137 = scmp.ne.s32.totalorder %s129, %s132
      %p138 = scmp.eq.s32.totalorder %s16, 0
      %p139 = por %p137, %p138
      %p140 = scmp.ne.s32.totalorder %s129, %s132
      %p141 = scmp.eq.s32.totalorder %s21, 2
      %p142 = por %p140, %p141
      %p143 = scmp.ne.s32.totalorder %s132, %s133
      %p144 = scmp.eq.s32.totalorder %s21, 0
      %p145 = por %p143, %p144
      %p146 = scmp.ne.s32.totalorder %s132, %s133
      %p147 = scmp.eq.s32.totalorder %s22, 2
      %p148 = por %p146, %p147
      %p150 = scmp.ne.s32.totalorder %s133, %s149
      %p151 = scmp.eq.s32.totalorder %s22, 0
      %p152 = por %p150, %p151
      %p153 = scmp.le.s32.totalorder 1, %s16
      %p154 = scmp.lt.s32.totalorder %s16, 4
      %p155 = pnand %p153, %p154
      %p156 = pneg %p155
      // Predicated region
      $region9: #{tpu_custom_call.1} parent=5 // pred_check
        _
      $region10: #{tpu_custom_call.1} parent=5 // pred_check_branch
        %158 = sbr.rel (%p155) target = $region12
      $region11: #{tpu_custom_call.1} parent=5 // pred_region
        %s159 = ssub.s32 %s16, 1
        // Predicated region
        $region13: #{tpu_custom_call.1} parent=11 // pred_check
          %p160 = pneg %p63
        $region14: #{tpu_custom_call.1} parent=11 // pred_check_branch
          %162 = sbr.rel (%p160) target = $region16
        $region15: #{tpu_custom_call.1} parent=11 // pred_region
          %s163 = smul.u32 32, %s26
          %s164 = smul.u32 2, %s28
          %s166 = ssub.s32 8192, 8192
          %167 = vsyncadd [#allocation4], %s166
          %s168 = smul.addr %s163, 2
          %s169 = sadd.s32 %s164, %s168
          %s170 = smul.addr %s169, 128
          %s171 = scalar_lea.hbm %s0, %s170
          %s172 = sshll.u32 [#allocation3], 4
          %s173 = int_to_ptr.vmem [resolvable:$true] %s172
          %178 = dma.hbm_to_vmem [thread:$0]  %s171, 8192, %s173, [#allocation4], 256, 256, 16
        $region16: #{tpu_custom_call.1} parent=11 // pred_fallthru
          _
      $region12: #{tpu_custom_call.1} parent=5 // pred_fallthru
        _
      %p179 = scmp.lt.s32.totalorder %s16, 3
      // Predicated region
      $region17: #{tpu_custom_call.1} parent=5 // pred_check
        %p180 = pneg %p179
      $region18: #{tpu_custom_call.1} parent=5 // pred_check_branch
        %182 = sbr.rel (%p180) target = $region20
      $region19: #{tpu_custom_call.1} parent=5 // pred_region
        // Predicated region
        $region21: #{tpu_custom_call.1} parent=19 // pred_check
          %p183 = pneg %p85
        $region22: #{tpu_custom_call.1} parent=19 // pred_check_branch
          %185 = sbr.rel (%p183) target = $region24
        $region23: #{tpu_custom_call.1} parent=19 // pred_region
          %s186 = sand.u32 %s16, 1
          %s187 = scalar_lea.sflag [#allocation7], %s186
          %s188 = sand.u32 %s75, 1
          %s189 = smul.addr %s188, 512
          %s190 = scalar_lea.vmem [#allocation6], %s189
          %s191 = smul.u32 32, %s25
          %s192 = smul.u32 2, %s24
          %s194 = ssub.s32 8192, 8192
          %195 = vsyncadd %s187, %s194
          %s196 = smul.addr %s191, 6
          %s197 = sadd.s32 %s192, %s196
          %s198 = smul.addr %s197, 128
          %s199 = scalar_lea.hbm %s1, %s198
          %s200 = sshll.u32 %s190, 4
          %s201 = int_to_ptr.vmem [resolvable:$true] %s200
          %206 = dma.hbm_to_vmem [thread:$0]  %s199, 8192, %s201, %s187, 768, 256, 16
        $region24: #{tpu_custom_call.1} parent=19 // pred_fallthru
          _
        // Predicated region
        $region25: #{tpu_custom_call.1} parent=19 // pred_check
          %p207 = pneg %p111
        $region26: #{tpu_custom_call.1} parent=19 // pred_check_branch
          %209 = sbr.rel (%p207) target = $region28
        $region27: #{tpu_custom_call.1} parent=19 // pred_region
          %s210 = sand.u32 %s16, 1
          %s211 = scalar_lea.sflag [#allocation7], %s210
          %s212 = sand.u32 %s101, 1
          %s213 = smul.addr %s212, 2
          %s214 = scalar_lea.vmem [#allocation8], %s213
          %s215 = smul.u32 2, %s24
          %s217 = ssub.s32 32, 32
          %218 = vsyncadd %s211, %s217
          %s219 = smul.addr %s215, 16
          %s220 = scalar_lea.hbm %s2, %s219
          %s222 = sshll.u32 %s214, 4
          %s223 = int_to_ptr.vmem [resolvable:$true] %s222
          %225 = dma.hbm_to_vmem [thread:$0]  %s220, 32, %s223, %s211
        $region28: #{tpu_custom_call.1} parent=19 // pred_fallthru
          _
      $region20: #{tpu_custom_call.1} parent=5 // pred_fallthru
        _
      %p226 = scmp.le.s32.totalorder 1, %s16
      %p227 = scmp.lt.s32.totalorder %s16, 4
      %p228 = pnand %p226, %p227
      %p229 = pneg %p228
      // Predicated region
      $region29: #{tpu_custom_call.1} parent=5 // pred_check
        _
      $region30: #{tpu_custom_call.1} parent=5 // pred_check_branch
        %231 = sbr.rel (%p228) target = $region32
      $region31: #{tpu_custom_call.1} parent=5 // pred_region
        %s232 = ssub.s32 %s16, 1
        // Predicated region
        $region33: #{tpu_custom_call.1} parent=31 // pred_check
          %p233 = pneg %p63
        $region34: #{tpu_custom_call.1} parent=31 // pred_check_branch
          %235 = sbr.rel (%p233) target = $region36
        $region35: #{tpu_custom_call.1} parent=31 // pred_region
          %236 = dma.done [#allocation4], 8192
        $region36: #{tpu_custom_call.1} parent=31 // pred_fallthru
          _
        %s237 = sand.u32 %s21, 1
        %s238 = scalar_lea.sflag [#allocation7], %s237
        %s239 = sand.u32 %s78, 1
        %s240 = smul.addr %s239, 512
        %s241 = scalar_lea.vmem [#allocation6], %s240
        // Predicated region
        $region37: #{tpu_custom_call.1} parent=31 // pred_check
          %p242 = pneg %p91
        $region38: #{tpu_custom_call.1} parent=31 // pred_check_branch
          %244 = sbr.rel (%p242) target = $region40
        $region39: #{tpu_custom_call.1} parent=31 // pred_region
          %245 = dma.done %s238, 8192
        $region40: #{tpu_custom_call.1} parent=31 // pred_fallthru
          _
        %s246 = sand.u32 %s21, 1
        %s247 = scalar_lea.sflag [#allocation7], %s246
        %s248 = sand.u32 %s104, 1
        %s249 = smul.addr %s248, 2
        %s250 = scalar_lea.vmem [#allocation8], %s249
        // Predicated region
        $region41: #{tpu_custom_call.1} parent=31 // pred_check
          %p251 = pneg %p117
        $region42: #{tpu_custom_call.1} parent=31 // pred_check_branch
          %253 = sbr.rel (%p251) target = $region44
        $region43: #{tpu_custom_call.1} parent=31 // pred_region
          %254 = dma.done %s247, 32
        $region44: #{tpu_custom_call.1} parent=31 // pred_fallthru
          _
        %p255 = pneg %p63
        %p256 = pneg %p60
        %s257 = sand.u32 %s21, 1
        %s258 = scalar_lea.sflag [#allocation7], %s257
        %s259 = sand.u32 %s78, 1
        %s260 = smul.addr %s259, 512
        %s261 = scalar_lea.vmem [#allocation6], %s260
        %p262 = pneg %p91
        %p263 = pneg %p88
        %s264 = sand.u32 %s21, 1
        %s265 = scalar_lea.sflag [#allocation7], %s264
        %s266 = sand.u32 %s104, 1
        %s267 = smul.addr %s266, 2
        %s268 = scalar_lea.vmem [#allocation8], %s267
        %p269 = pneg %p117
        %p270 = pneg %p114
        %p271 = pneg %p145
        %p272 = pneg %p142
        %s273 = sand.u32 %s132, 1
        %s274 = scalar_lea.sflag [#allocation5], %s273
        %s275 = sand.u32 %s132, 1
        %s276 = smul.addr %s275, 512
        %s277 = scalar_lea.vmem [#allocation9], %s276
        %s278 = smul.u32 32, %s26
        %s279 = smul.u32 2, %s28
        %s280 = smul.u32 32, %s28
        %s281 = smul.u32 2, %s27
        %s282 = smul.u32 2, %s27
        %s283 = smul.u32 32, %s26
        %s284 = smul.u32 2, %s27
        %p285 = scmp.eq.s32.totalorder %s28, 0
        // Predicated region
        $region45: #{tpu_custom_call.1} parent=31 // pred_check
          %p286 = pneg %p285
        $region46: #{tpu_custom_call.1} parent=31 // pred_check_branch
          %288 = sbr.rel (%p286) target = $region48
        $region47: #{tpu_custom_call.1} parent=31 // pred_region
          %289 = vst [vmem:[#allocation2] sm:$0xff] 0.0
          %290 = vst [vmem:[#allocation2 + $0x8] sm:$0xff] 0.0
          %291 = vst [vmem:[#allocation2 + $0x10] sm:$0xff] 0.0
          %292 = vst [vmem:[#allocation2 + $0x18] sm:$0xff] 0.0
          %293 = vst [vmem:[#allocation2 + $0x20] sm:$0xff] 0.0
          %294 = vst [vmem:[#allocation2 + $0x28] sm:$0xff] 0.0
          %295 = vst [vmem:[#allocation2 + $0x30] sm:$0xff] 0.0
          %296 = vst [vmem:[#allocation2 + $0x38] sm:$0xff] 0.0
          %297 = vst [vmem:[#allocation2 + $0x40] sm:$0xff] 0.0
          %298 = vst [vmem:[#allocation2 + $0x48] sm:$0xff] 0.0
          %299 = vst [vmem:[#allocation2 + $0x50] sm:$0xff] 0.0
          %300 = vst [vmem:[#allocation2 + $0x58] sm:$0xff] 0.0
          %301 = vst [vmem:[#allocation2 + $0x60] sm:$0xff] 0.0
          %302 = vst [vmem:[#allocation2 + $0x68] sm:$0xff] 0.0
          %303 = vst [vmem:[#allocation2 + $0x70] sm:$0xff] 0.0
          %304 = vst [vmem:[#allocation2 + $0x78] sm:$0xff] 0.0
          %305 = vst [vmem:[#allocation2 + $0x80] sm:$0xff] 0.0
          %306 = vst [vmem:[#allocation2 + $0x88] sm:$0xff] 0.0
          %307 = vst [vmem:[#allocation2 + $0x90] sm:$0xff] 0.0
          %308 = vst [vmem:[#allocation2 + $0x98] sm:$0xff] 0.0
          %309 = vst [vmem:[#allocation2 + $0xa0] sm:$0xff] 0.0
          %310 = vst [vmem:[#allocation2 + $0xa8] sm:$0xff] 0.0
          %311 = vst [vmem:[#allocation2 + $0xb0] sm:$0xff] 0.0
          %312 = vst [vmem:[#allocation2 + $0xb8] sm:$0xff] 0.0
          %313 = vst [vmem:[#allocation2 + $0xc0] sm:$0xff] 0.0
          %314 = vst [vmem:[#allocation2 + $0xc8] sm:$0xff] 0.0
          %315 = vst [vmem:[#allocation2 + $0xd0] sm:$0xff] 0.0
          %316 = vst [vmem:[#allocation2 + $0xd8] sm:$0xff] 0.0
          %317 = vst [vmem:[#allocation2 + $0xe0] sm:$0xff] 0.0
          %318 = vst [vmem:[#allocation2 + $0xe8] sm:$0xff] 0.0
          %319 = vst [vmem:[#allocation2 + $0xf0] sm:$0xff] 0.0
          %320 = vst [vmem:[#allocation2 + $0xf8] sm:$0xff] 0.0
          %321 = vst [vmem:[#allocation2 + $0x100] sm:$0xff] 0.0
          %322 = vst [vmem:[#allocation2 + $0x108] sm:$0xff] 0.0
          %323 = vst [vmem:[#allocation2 + $0x110] sm:$0xff] 0.0
          %324 = vst [vmem:[#allocation2 + $0x118] sm:$0xff] 0.0
          %325 = vst [vmem:[#allocation2 + $0x120] sm:$0xff] 0.0
          %326 = vst [vmem:[#allocation2 + $0x128] sm:$0xff] 0.0
          %327 = vst [vmem:[#allocation2 + $0x130] sm:$0xff] 0.0
          %328 = vst [vmem:[#allocation2 + $0x138] sm:$0xff] 0.0
          %329 = vst [vmem:[#allocation2 + $0x140] sm:$0xff] 0.0
          %330 = vst [vmem:[#allocation2 + $0x148] sm:$0xff] 0.0
          %331 = vst [vmem:[#allocation2 + $0x150] sm:$0xff] 0.0
          %332 = vst [vmem:[#allocation2 + $0x158] sm:$0xff] 0.0
          %333 = vst [vmem:[#allocation2 + $0x160] sm:$0xff] 0.0
          %334 = vst [vmem:[#allocation2 + $0x168] sm:$0xff] 0.0
          %335 = vst [vmem:[#allocation2 + $0x170] sm:$0xff] 0.0
          %336 = vst [vmem:[#allocation2 + $0x178] sm:$0xff] 0.0
          %337 = vst [vmem:[#allocation2 + $0x180] sm:$0xff] 0.0
          %338 = vst [vmem:[#allocation2 + $0x188] sm:$0xff] 0.0
          %339 = vst [vmem:[#allocation2 + $0x190] sm:$0xff] 0.0
          %340 = vst [vmem:[#allocation2 + $0x198] sm:$0xff] 0.0
          %341 = vst [vmem:[#allocation2 + $0x1a0] sm:$0xff] 0.0
          %342 = vst [vmem:[#allocation2 + $0x1a8] sm:$0xff] 0.0
          %343 = vst [vmem:[#allocation2 + $0x1b0] sm:$0xff] 0.0
          %344 = vst [vmem:[#allocation2 + $0x1b8] sm:$0xff] 0.0
          %345 = vst [vmem:[#allocation2 + $0x1c0] sm:$0xff] 0.0
          %346 = vst [vmem:[#allocation2 + $0x1c8] sm:$0xff] 0.0
          %347 = vst [vmem:[#allocation2 + $0x1d0] sm:$0xff] 0.0
          %348 = vst [vmem:[#allocation2 + $0x1d8] sm:$0xff] 0.0
          %349 = vst [vmem:[#allocation2 + $0x1e0] sm:$0xff] 0.0
          %350 = vst [vmem:[#allocation2 + $0x1e8] sm:$0xff] 0.0
          %351 = vst [vmem:[#allocation2 + $0x1f0] sm:$0xff] 0.0
          %352 = vst [vmem:[#allocation2 + $0x1f8] sm:$0xff] 0.0
        $region48: #{tpu_custom_call.1} parent=31 // pred_fallthru
          _
        %v353 = vld [vmem:[#allocation2] sm:$0xff]
        %v354 = vld [vmem:[#allocation2 + $0x8] sm:$0xff]
        %v355 = vld [vmem:[#allocation2 + $0x10] sm:$0xff]
        %v356 = vld [vmem:[#allocation2 + $0x18] sm:$0xff]
        %v357 = vld [vmem:[#allocation2 + $0x20] sm:$0xff]
        %v358 = vld [vmem:[#allocation2 + $0x28] sm:$0xff]
        %v359 = vld [vmem:[#allocation2 + $0x30] sm:$0xff]
        %v360 = vld [vmem:[#allocation2 + $0x38] sm:$0xff]
        %v361 = vld [vmem:[#allocation2 + $0x40] sm:$0xff]
        %v362 = vld [vmem:[#allocation2 + $0x48] sm:$0xff]
        %v363 = vld [vmem:[#allocation2 + $0x50] sm:$0xff]
        %v364 = vld [vmem:[#allocation2 + $0x58] sm:$0xff]
        %v365 = vld [vmem:[#allocation2 + $0x60] sm:$0xff]
        %v366 = vld [vmem:[#allocation2 + $0x68] sm:$0xff]
        %v367 = vld [vmem:[#allocation2 + $0x70] sm:$0xff]
        %v368 = vld [vmem:[#allocation2 + $0x78] sm:$0xff]
        %v369 = vld [vmem:[#allocation2 + $0x80] sm:$0xff]
        %v370 = vld [vmem:[#allocation2 + $0x88] sm:$0xff]
        %v371 = vld [vmem:[#allocation2 + $0x90] sm:$0xff]
        %v372 = vld [vmem:[#allocation2 + $0x98] sm:$0xff]
        %v373 = vld [vmem:[#allocation2 + $0xa0] sm:$0xff]
        %v374 = vld [vmem:[#allocation2 + $0xa8] sm:$0xff]
        %v375 = vld [vmem:[#allocation2 + $0xb0] sm:$0xff]
        %v376 = vld [vmem:[#allocation2 + $0xb8] sm:$0xff]
        %v377 = vld [vmem:[#allocation2 + $0xc0] sm:$0xff]
        %v378 = vld [vmem:[#allocation2 + $0xc8] sm:$0xff]
        %v379 = vld [vmem:[#allocation2 + $0xd0] sm:$0xff]
        %v380 = vld [vmem:[#allocation2 + $0xd8] sm:$0xff]
        %v381 = vld [vmem:[#allocation2 + $0xe0] sm:$0xff]
        %v382 = vld [vmem:[#allocation2 + $0xe8] sm:$0xff]
        %v383 = vld [vmem:[#allocation2 + $0xf0] sm:$0xff]
        %v384 = vld [vmem:[#allocation2 + $0xf8] sm:$0xff]
        %v385 = vld [vmem:[#allocation2 + $0x100] sm:$0xff]
        %v386 = vld [vmem:[#allocation2 + $0x108] sm:$0xff]
        %v387 = vld [vmem:[#allocation2 + $0x110] sm:$0xff]
        %v388 = vld [vmem:[#allocation2 + $0x118] sm:$0xff]
        %v389 = vld [vmem:[#allocation2 + $0x120] sm:$0xff]
        %v390 = vld [vmem:[#allocation2 + $0x128] sm:$0xff]
        %v391 = vld [vmem:[#allocation2 + $0x130] sm:$0xff]
        %v392 = vld [vmem:[#allocation2 + $0x138] sm:$0xff]
        %v393 = vld [vmem:[#allocation2 + $0x140] sm:$0xff]
        %v394 = vld [vmem:[#allocation2 + $0x148] sm:$0xff]
        %v395 = vld [vmem:[#allocation2 + $0x150] sm:$0xff]
        %v396 = vld [vmem:[#allocation2 + $0x158] sm:$0xff]
        %v397 = vld [vmem:[#allocation2 + $0x160] sm:$0xff]
        %v398 = vld [vmem:[#allocation2 + $0x168] sm:$0xff]
        %v399 = vld [vmem:[#allocation2 + $0x170] sm:$0xff]
        %v400 = vld [vmem:[#allocation2 + $0x178] sm:$0xff]
        %v401 = vld [vmem:[#allocation2 + $0x180] sm:$0xff]
        %v402 = vld [vmem:[#allocation2 + $0x188] sm:$0xff]
        %v403 = vld [vmem:[#allocation2 + $0x190] sm:$0xff]
        %v404 = vld [vmem:[#allocation2 + $0x198] sm:$0xff]
        %v405 = vld [vmem:[#allocation2 + $0x1a0] sm:$0xff]
        %v406 = vld [vmem:[#allocation2 + $0x1a8] sm:$0xff]
        %v407 = vld [vmem:[#allocation2 + $0x1b0] sm:$0xff]
        %v408 = vld [vmem:[#allocation2 + $0x1b8] sm:$0xff]
        %v409 = vld [vmem:[#allocation2 + $0x1c0] sm:$0xff]
        %v410 = vld [vmem:[#allocation2 + $0x1c8] sm:$0xff]
        %v411 = vld [vmem:[#allocation2 + $0x1d0] sm:$0xff]
        %v412 = vld [vmem:[#allocation2 + $0x1d8] sm:$0xff]
        %v413 = vld [vmem:[#allocation2 + $0x1e0] sm:$0xff]
        %v414 = vld [vmem:[#allocation2 + $0x1e8] sm:$0xff]
        %v415 = vld [vmem:[#allocation2 + $0x1f0] sm:$0xff]
        %v416 = vld [vmem:[#allocation2 + $0x1f8] sm:$0xff]
        %v417 = vld [vmem:[#allocation3] sm:$0xff]
        %v418 = vld [vmem:[#allocation3 + $0x8] sm:$0xff]
        %v419 = vld [vmem:[#allocation3 + $0x10] sm:$0xff]
        %v420 = vld [vmem:[#allocation3 + $0x18] sm:$0xff]
        %v421 = vld [vmem:[#allocation3 + $0x20] sm:$0xff]
        %v422 = vld [vmem:[#allocation3 + $0x28] sm:$0xff]
        %v423 = vld [vmem:[#allocation3 + $0x30] sm:$0xff]
        %v424 = vld [vmem:[#allocation3 + $0x38] sm:$0xff]
        %v425 = vld [vmem:[#allocation3 + $0x40] sm:$0xff]
        %v426 = vld [vmem:[#allocation3 + $0x48] sm:$0xff]
        %v427 = vld [vmem:[#allocation3 + $0x50] sm:$0xff]
        %v428 = vld [vmem:[#allocation3 + $0x58] sm:$0xff]
        %v429 = vld [vmem:[#allocation3 + $0x60] sm:$0xff]
        %v430 = vld [vmem:[#allocation3 + $0x68] sm:$0xff]
        %v431 = vld [vmem:[#allocation3 + $0x70] sm:$0xff]
        %v432 = vld [vmem:[#allocation3 + $0x78] sm:$0xff]
        %v433 = vld [vmem:[#allocation3 + $0x80] sm:$0xff]
        %v434 = vld [vmem:[#allocation3 + $0x88] sm:$0xff]
        %v435 = vld [vmem:[#allocation3 + $0x90] sm:$0xff]
        %v436 = vld [vmem:[#allocation3 + $0x98] sm:$0xff]
        %v437 = vld [vmem:[#allocation3 + $0xa0] sm:$0xff]
        %v438 = vld [vmem:[#allocation3 + $0xa8] sm:$0xff]
        %v439 = vld [vmem:[#allocation3 + $0xb0] sm:$0xff]
        %v440 = vld [vmem:[#allocation3 + $0xb8] sm:$0xff]
        %v441 = vld [vmem:[#allocation3 + $0xc0] sm:$0xff]
        %v442 = vld [vmem:[#allocation3 + $0xc8] sm:$0xff]
        %v443 = vld [vmem:[#allocation3 + $0xd0] sm:$0xff]
        %v444 = vld [vmem:[#allocation3 + $0xd8] sm:$0xff]
        %v445 = vld [vmem:[#allocation3 + $0xe0] sm:$0xff]
        %v446 = vld [vmem:[#allocation3 + $0xe8] sm:$0xff]
        %v447 = vld [vmem:[#allocation3 + $0xf0] sm:$0xff]
        %v448 = vld [vmem:[#allocation3 + $0xf8] sm:$0xff]
        %v449 = vld [vmem:[#allocation3 + $0x100] sm:$0xff]
        %v450 = vld [vmem:[#allocation3 + $0x108] sm:$0xff]
        %v451 = vld [vmem:[#allocation3 + $0x110] sm:$0xff]
        %v452 = vld [vmem:[#allocation3 + $0x118] sm:$0xff]
        %v453 = vld [vmem:[#allocation3 + $0x120] sm:$0xff]
        %v454 = vld [vmem:[#allocation3 + $0x128] sm:$0xff]
        %v455 = vld [vmem:[#allocation3 + $0x130] sm:$0xff]
        %v456 = vld [vmem:[#allocation3 + $0x138] sm:$0xff]
        %v457 = vld [vmem:[#allocation3 + $0x140] sm:$0xff]
        %v458 = vld [vmem:[#allocation3 + $0x148] sm:$0xff]
        %v459 = vld [vmem:[#allocation3 + $0x150] sm:$0xff]
        %v460 = vld [vmem:[#allocation3 + $0x158] sm:$0xff]
        %v461 = vld [vmem:[#allocation3 + $0x160] sm:$0xff]
        %v462 = vld [vmem:[#allocation3 + $0x168] sm:$0xff]
        %v463 = vld [vmem:[#allocation3 + $0x170] sm:$0xff]
        %v464 = vld [vmem:[#allocation3 + $0x178] sm:$0xff]
        %v465 = vld [vmem:[#allocation3 + $0x180] sm:$0xff]
        %v466 = vld [vmem:[#allocation3 + $0x188] sm:$0xff]
        %v467 = vld [vmem:[#allocation3 + $0x190] sm:$0xff]
        %v468 = vld [vmem:[#allocation3 + $0x198] sm:$0xff]
        %v469 = vld [vmem:[#allocation3 + $0x1a0] sm:$0xff]
        %v470 = vld [vmem:[#allocation3 + $0x1a8] sm:$0xff]
        %v471 = vld [vmem:[#allocation3 + $0x1b0] sm:$0xff]
        %v472 = vld [vmem:[#allocation3 + $0x1b8] sm:$0xff]
        %v473 = vld [vmem:[#allocation3 + $0x1c0] sm:$0xff]
        %v474 = vld [vmem:[#allocation3 + $0x1c8] sm:$0xff]
        %v475 = vld [vmem:[#allocation3 + $0x1d0] sm:$0xff]
        %v476 = vld [vmem:[#allocation3 + $0x1d8] sm:$0xff]
        %v477 = vld [vmem:[#allocation3 + $0x1e0] sm:$0xff]
        %v478 = vld [vmem:[#allocation3 + $0x1e8] sm:$0xff]
        %v479 = vld [vmem:[#allocation3 + $0x1f0] sm:$0xff]
        %v480 = vld [vmem:[#allocation3 + $0x1f8] sm:$0xff]
        %v481 = vld [vmem:[%s241] sm:$0xff]
        %v482 = vld [vmem:[%s241 + $0x8] sm:$0xff]
        %v483 = vld [vmem:[%s241 + $0x10] sm:$0xff]
        %v484 = vld [vmem:[%s241 + $0x18] sm:$0xff]
        %v485 = vld [vmem:[%s241 + $0x20] sm:$0xff]
        %v486 = vld [vmem:[%s241 + $0x28] sm:$0xff]
        %v487 = vld [vmem:[%s241 + $0x30] sm:$0xff]
        %v488 = vld [vmem:[%s241 + $0x38] sm:$0xff]
        %v489 = vld [vmem:[%s241 + $0x40] sm:$0xff]
        %v490 = vld [vmem:[%s241 + $0x48] sm:$0xff]
        %v491 = vld [vmem:[%s241 + $0x50] sm:$0xff]
        %v492 = vld [vmem:[%s241 + $0x58] sm:$0xff]
        %v493 = vld [vmem:[%s241 + $0x60] sm:$0xff]
        %v494 = vld [vmem:[%s241 + $0x68] sm:$0xff]
        %v495 = vld [vmem:[%s241 + $0x70] sm:$0xff]
        %v496 = vld [vmem:[%s241 + $0x78] sm:$0xff]
        %v497 = vld [vmem:[%s241 + $0x80] sm:$0xff]
        %v498 = vld [vmem:[%s241 + $0x88] sm:$0xff]
        %v499 = vld [vmem:[%s241 + $0x90] sm:$0xff]
        %v500 = vld [vmem:[%s241 + $0x98] sm:$0xff]
        %v501 = vld [vmem:[%s241 + $0xa0] sm:$0xff]
        %v502 = vld [vmem:[%s241 + $0xa8] sm:$0xff]
        %v503 = vld [vmem:[%s241 + $0xb0] sm:$0xff]
        %v504 = vld [vmem:[%s241 + $0xb8] sm:$0xff]
        %v505 = vld [vmem:[%s241 + $0xc0] sm:$0xff]
        %v506 = vld [vmem:[%s241 + $0xc8] sm:$0xff]
        %v507 = vld [vmem:[%s241 + $0xd0] sm:$0xff]
        %v508 = vld [vmem:[%s241 + $0xd8] sm:$0xff]
        %v509 = vld [vmem:[%s241 + $0xe0] sm:$0xff]
        %v510 = vld [vmem:[%s241 + $0xe8] sm:$0xff]
        %v511 = vld [vmem:[%s241 + $0xf0] sm:$0xff]
        %v512 = vld [vmem:[%s241 + $0xf8] sm:$0xff]
        %v513 = vld [vmem:[%s241 + $0x100] sm:$0xff]
        %v514 = vld [vmem:[%s241 + $0x108] sm:$0xff]
        %v515 = vld [vmem:[%s241 + $0x110] sm:$0xff]
        %v516 = vld [vmem:[%s241 + $0x118] sm:$0xff]
        %v517 = vld [vmem:[%s241 + $0x120] sm:$0xff]
        %v518 = vld [vmem:[%s241 + $0x128] sm:$0xff]
        %v519 = vld [vmem:[%s241 + $0x130] sm:$0xff]
        %v520 = vld [vmem:[%s241 + $0x138] sm:$0xff]
        %v521 = vld [vmem:[%s241 + $0x140] sm:$0xff]
        %v522 = vld [vmem:[%s241 + $0x148] sm:$0xff]
        %v523 = vld [vmem:[%s241 + $0x150] sm:$0xff]
        %v524 = vld [vmem:[%s241 + $0x158] sm:$0xff]
        %v525 = vld [vmem:[%s241 + $0x160] sm:$0xff]
        %v526 = vld [vmem:[%s241 + $0x168] sm:$0xff]
        %v527 = vld [vmem:[%s241 + $0x170] sm:$0xff]
        %v528 = vld [vmem:[%s241 + $0x178] sm:$0xff]
        %v529 = vld [vmem:[%s241 + $0x180] sm:$0xff]
        %v530 = vld [vmem:[%s241 + $0x188] sm:$0xff]
        %v531 = vld [vmem:[%s241 + $0x190] sm:$0xff]
        %v532 = vld [vmem:[%s241 + $0x198] sm:$0xff]
        %v533 = vld [vmem:[%s241 + $0x1a0] sm:$0xff]
        %v534 = vld [vmem:[%s241 + $0x1a8] sm:$0xff]
        %v535 = vld [vmem:[%s241 + $0x1b0] sm:$0xff]
        %v536 = vld [vmem:[%s241 + $0x1b8] sm:$0xff]
        %v537 = vld [vmem:[%s241 + $0x1c0] sm:$0xff]
        %v538 = vld [vmem:[%s241 + $0x1c8] sm:$0xff]
        %v539 = vld [vmem:[%s241 + $0x1d0] sm:$0xff]
        %v540 = vld [vmem:[%s241 + $0x1d8] sm:$0xff]
        %v541 = vld [vmem:[%s241 + $0x1e0] sm:$0xff]
        %v542 = vld [vmem:[%s241 + $0x1e8] sm:$0xff]
        %v543 = vld [vmem:[%s241 + $0x1f0] sm:$0xff]
        %v544 = vld [vmem:[%s241 + $0x1f8] sm:$0xff]
        %545 = vmatprep.subr.mxu0 %v482
        %546 = vmatpush1.msra.mxu0 %v481
        %547 = vmatprep.subr.mxu0 %v484
        %548 = vmatpush1.msra.mxu0 %v483
        %549 = vmatprep.subr.mxu0 %v486
        %550 = vmatpush1.msra.mxu0 %v485
        %551 = vmatprep.subr.mxu0 %v488
        %552 = vmatpush1.msra.mxu0 %v487
        %553 = vmatprep.subr.mxu0 %v490
        %554 = vmatpush1.msra.mxu0 %v489
        %555 = vmatprep.subr.mxu0 %v492
        %556 = vmatpush1.msra.mxu0 %v491
        %557 = vmatprep.subr.mxu0 %v494
        %558 = vmatpush1.msra.mxu0 %v493
        %559 = vmatprep.subr.mxu0 %v496
        %560 = vmatpush1.msra.mxu0 %v495
        %561 = vmatprep.subr.mxu0 %v498
        %562 = vmatpush1.msra.mxu0 %v497
        %563 = vmatprep.subr.mxu0 %v500
        %564 = vmatpush1.msra.mxu0 %v499
        %565 = vmatprep.subr.mxu0 %v502
        %566 = vmatpush1.msra.mxu0 %v501
        %567 = vmatprep.subr.mxu0 %v504
        %568 = vmatpush1.msra.mxu0 %v503
        %569 = vmatprep.subr.mxu0 %v506
        %570 = vmatpush1.msra.mxu0 %v505
        %571 = vmatprep.subr.mxu0 %v508
        %572 = vmatpush1.msra.mxu0 %v507
        %573 = vmatprep.subr.mxu0 %v510
        %574 = vmatpush1.msra.mxu0 %v509
        %575 = vmatprep.subr.mxu0 %v512
        %576 = vmatpush1.msra.mxu0 %v511
        %577 = vmatprep.subr.mxu0 %v514
        %578 = vmatpush1.msra.mxu0 %v513
        %579 = vmatprep.subr.mxu0 %v516
        %580 = vmatpush1.msra.mxu0 %v515
        %581 = vmatprep.subr.mxu0 %v518
        %582 = vmatpush1.msra.mxu0 %v517
        %583 = vmatprep.subr.mxu0 %v520
        %584 = vmatpush1.msra.mxu0 %v519
        %585 = vmatprep.subr.mxu0 %v522
        %586 = vmatpush1.msra.mxu0 %v521
        %587 = vmatprep.subr.mxu0 %v524
        %588 = vmatpush1.msra.mxu0 %v523
        %589 = vmatprep.subr.mxu0 %v526
        %590 = vmatpush1.msra.mxu0 %v525
        %591 = vmatprep.subr.mxu0 %v528
        %592 = vmatpush1.msra.mxu0 %v527
        %593 = vmatprep.subr.mxu0 %v530
        %594 = vmatpush1.msra.mxu0 %v529
        %595 = vmatprep.subr.mxu0 %v532
        %596 = vmatpush1.msra.mxu0 %v531
        %597 = vmatprep.subr.mxu0 %v534
        %598 = vmatpush1.msra.mxu0 %v533
        %599 = vmatprep.subr.mxu0 %v536
        %600 = vmatpush1.msra.mxu0 %v535
        %601 = vmatprep.subr.mxu0 %v538
        %602 = vmatpush1.msra.mxu0 %v537
        %603 = vmatprep.subr.mxu0 %v540
        %604 = vmatpush1.msra.mxu0 %v539
        %605 = vmatprep.subr.mxu0 %v542
        %606 = vmatpush1.msra.mxu0 %v541
        %607 = vmatprep.subr.mxu0 %v544
        %608 = vmatpush1.msra.mxu0 %v543
        %609 = vmatprep.mubr.f32.mxu0 %v418
        %610 = vmatmul.mubr.f32.gmra.mrb[0].mxu0 %v417
        %v611 = vpop.f32.mrb[0].mxu0
        %v612 = vadd.f32 0.0, %v611
        %v613 = vpop.f32.mrb[0].mxu0
        %v614 = vadd.f32 0.0, %v613
        %615 = vmatprep.mubr.f32.mxu0 %v420
        %616 = vmatmul.mubr.f32.gmra.mrb[0].mxu0 %v419
        %v617 = vpop.f32.mrb[0].mxu0
        %v618 = vadd.f32 0.0, %v617
        %v619 = vpop.f32.mrb[0].mxu0
        %v620 = vadd.f32 0.0, %v619
        %621 = vmatprep.mubr.f32.mxu0 %v422
        %622 = vmatmul.mubr.f32.gmra.mrb[0].mxu0 %v421
        %v623 = vpop.f32.mrb[0].mxu0
        %v624 = vadd.f32 0.0, %v623
        %v625 = vpop.f32.mrb[0].mxu0
        %v626 = vadd.f32 0.0, %v625
        %627 = vmatprep.mubr.f32.mxu0 %v424
        %628 = vmatmul.mubr.f32.gmra.mrb[0].mxu0 %v423
        %v629 = vpop.f32.mrb[0].mxu0
        %v630 = vadd.f32 0.0, %v629
        %v631 = vpop.f32.mrb[0].mxu0
        %v632 = vadd.f32 0.0, %v631
        %633 = vmatprep.mubr.f32.mxu0 %v426
        %634 = vmatmul.mubr.f32.gmra.mrb[0].mxu0 %v425
        %v635 = vpop.f32.mrb[0].mxu0
        %v636 = vadd.f32 0.0, %v635
        %v637 = vpop.f32.mrb[0].mxu0
        %v638 = vadd.f32 0.0, %v637
        %639 = vmatprep.mubr.f32.mxu0 %v428
        %640 = vmatmul.mubr.f32.gmra.mrb[0].mxu0 %v427
        %v641 = vpop.f32.mrb[0].mxu0
        %v642 = vadd.f32 0.0, %v641
        %v643 = vpop.f32.mrb[0].mxu0
        %v644 = vadd.f32 0.0, %v643
        %645 = vmatprep.mubr.f32.mxu0 %v430
        %646 = vmatmul.mubr.f32.gmra.mrb[0].mxu0 %v429
        %v647 = vpop.f32.mrb[0].mxu0
        %v648 = vadd.f32 0.0, %v647
        %v649 = vpop.f32.mrb[0].mxu0
        %v650 = vadd.f32 0.0, %v649
        %651 = vmatprep.mubr.f32.mxu0 %v432
        %652 = vmatmul.mubr.f32.gmra.mrb[0].mxu0 %v431
        %v653 = vpop.f32.mrb[0].mxu0
        %v654 = vadd.f32 0.0, %v653
        %v655 = vpop.f32.mrb[0].mxu0
        %v656 = vadd.f32 0.0, %v655
        %657 = vmatprep.mubr.f32.mxu0 %v434
        %658 = vmatmul.mubr.f32.gmra.mrb[0].mxu0 %v433
        %v659 = vpop.f32.mrb[0].mxu0
        %v660 = vadd.f32 0.0, %v659
        %v661 = vpop.f32.mrb[0].mxu0
        %v662 = vadd.f32 0.0, %v661
        %663 = vmatprep.mubr.f32.mxu0 %v436
        %664 = vmatmul.mubr.f32.gmra.mrb[0].mxu0 %v435
        %v665 = vpop.f32.mrb[0].mxu0
        %v666 = vadd.f32 0.0, %v665
        %v667 = vpop.f32.mrb[0].mxu0
        %v668 = vadd.f32 0.0, %v667
        %669 = vmatprep.mubr.f32.mxu0 %v438
        %670 = vmatmul.mubr.f32.gmra.mrb[0].mxu0 %v437
        %v671 = vpop.f32.mrb[0].mxu0
        %v672 = vadd.f32 0.0, %v671
        %v673 = vpop.f32.mrb[0].mxu0
        %v674 = vadd.f32 0.0, %v673
        %675 = vmatprep.mubr.f32.mxu0 %v440
        %676 = vmatmul.mubr.f32.gmra.mrb[0].mxu0 %v439
        %v677 = vpop.f32.mrb[0].mxu0
        %v678 = vadd.f32 0.0, %v677
        %v679 = vpop.f32.mrb[0].mxu0
        %v680 = vadd.f32 0.0, %v679
        %681 = vmatprep.mubr.f32.mxu0 %v442
        %682 = vmatmul.mubr.f32.gmra.mrb[0].mxu0 %v441
        %v683 = vpop.f32.mrb[0].mxu0
        %v684 = vadd.f32 0.0, %v683
        %v685 = vpop.f32.mrb[0].mxu0
        %v686 = vadd.f32 0.0, %v685
        %687 = vmatprep.mubr.f32.mxu0 %v444
        %688 = vmatmul.mubr.f32.gmra.mrb[0].mxu0 %v443
        %v689 = vpop.f32.mrb[0].mxu0
        %v690 = vadd.f32 0.0, %v689
        %v691 = vpop.f32.mrb[0].mxu0
        %v692 = vadd.f32 0.0, %v691
        %693 = vmatprep.mubr.f32.mxu0 %v446
        %694 = vmatmul.mubr.f32.gmra.mrb[0].mxu0 %v445
        %v695 = vpop.f32.mrb[0].mxu0
        %v696 = vadd.f32 0.0, %v695
        %v697 = vpop.f32.mrb[0].mxu0
        %v698 = vadd.f32 0.0, %v697
        %699 = vmatprep.mubr.f32.mxu0 %v448
        %700 = vmatmul.mubr.f32.gmra.mrb[0].mxu0 %v447
        %v701 = vpop.f32.mrb[0].mxu0
        %v702 = vadd.f32 0.0, %v701
        %v703 = vpop.f32.mrb[0].mxu0
        %v704 = vadd.f32 0.0, %v703
        %705 = vmatprep.mubr.f32.mxu0 %v450
        %706 = vmatmul.mubr.f32.gmra.mrb[0].mxu0 %v449
        %v707 = vpop.f32.mrb[0].mxu0
        %v708 = vadd.f32 0.0, %v707
        %v709 = vpop.f32.mrb[0].mxu0
        %v710 = vadd.f32 0.0, %v709
        %711 = vmatprep.mubr.f32.mxu0 %v452
        %712 = vmatmul.mubr.f32.gmra.mrb[0].mxu0 %v451
        %v713 = vpop.f32.mrb[0].mxu0
        %v714 = vadd.f32 0.0, %v713
        %v715 = vpop.f32.mrb[0].mxu0
        %v716 = vadd.f32 0.0, %v715
        %717 = vmatprep.mubr.f32.mxu0 %v454
        %718 = vmatmul.mubr.f32.gmra.mrb[0].mxu0 %v453
        %v719 = vpop.f32.mrb[0].mxu0
        %v720 = vadd.f32 0.0, %v719
        %v721 = vpop.f32.mrb[0].mxu0
        %v722 = vadd.f32 0.0, %v721
        %723 = vmatprep.mubr.f32.mxu0 %v456
        %724 = vmatmul.mubr.f32.gmra.mrb[0].mxu0 %v455
        %v725 = vpop.f32.mrb[0].mxu0
        %v726 = vadd.f32 0.0, %v725
        %v727 = vpop.f32.mrb[0].mxu0
        %v728 = vadd.f32 0.0, %v727
        %729 = vmatprep.mubr.f32.mxu0 %v458
        %730 = vmatmul.mubr.f32.gmra.mrb[0].mxu0 %v457
        %v731 = vpop.f32.mrb[0].mxu0
        %v732 = vadd.f32 0.0, %v731
        %v733 = vpop.f32.mrb[0].mxu0
        %v734 = vadd.f32 0.0, %v733
        %735 = vmatprep.mubr.f32.mxu0 %v460
        %736 = vmatmul.mubr.f32.gmra.mrb[0].mxu0 %v459
        %v737 = vpop.f32.mrb[0].mxu0
        %v738 = vadd.f32 0.0, %v737
        %v739 = vpop.f32.mrb[0].mxu0
        %v740 = vadd.f32 0.0, %v739
        %741 = vmatprep.mubr.f32.mxu0 %v462
        %742 = vmatmul.mubr.f32.gmra.mrb[0].mxu0 %v461
        %v743 = vpop.f32.mrb[0].mxu0
        %v744 = vadd.f32 0.0, %v743
        %v745 = vpop.f32.mrb[0].mxu0
        %v746 = vadd.f32 0.0, %v745
        %747 = vmatprep.mubr.f32.mxu0 %v464
        %748 = vmatmul.mubr.f32.gmra.mrb[0].mxu0 %v463
        %v749 = vpop.f32.mrb[0].mxu0
        %v750 = vadd.f32 0.0, %v749
        %v751 = vpop.f32.mrb[0].mxu0
        %v752 = vadd.f32 0.0, %v751
        %753 = vmatprep.mubr.f32.mxu0 %v466
        %754 = vmatmul.mubr.f32.gmra.mrb[0].mxu0 %v465
        %v755 = vpop.f32.mrb[0].mxu0
        %v756 = vadd.f32 0.0, %v755
        %v757 = vpop.f32.mrb[0].mxu0
        %v758 = vadd.f32 0.0, %v757
        %759 = vmatprep.mubr.f32.mxu0 %v468
        %760 = vmatmul.mubr.f32.gmra.mrb[0].mxu0 %v467
        %v761 = vpop.f32.mrb[0].mxu0
        %v762 = vadd.f32 0.0, %v761
        %v763 = vpop.f32.mrb[0].mxu0
        %v764 = vadd.f32 0.0, %v763
        %765 = vmatprep.mubr.f32.mxu0 %v470
        %766 = vmatmul.mubr.f32.gmra.mrb[0].mxu0 %v469
        %v767 = vpop.f32.mrb[0].mxu0
        %v768 = vadd.f32 0.0, %v767
        %v769 = vpop.f32.mrb[0].mxu0
        %v770 = vadd.f32 0.0, %v769
        %771 = vmatprep.mubr.f32.mxu0 %v472
        %772 = vmatmul.mubr.f32.gmra.mrb[0].mxu0 %v471
        %v773 = vpop.f32.mrb[0].mxu0
        %v774 = vadd.f32 0.0, %v773
        %v775 = vpop.f32.mrb[0].mxu0
        %v776 = vadd.f32 0.0, %v775
        %777 = vmatprep.mubr.f32.mxu0 %v474
        %778 = vmatmul.mubr.f32.gmra.mrb[0].mxu0 %v473
        %v779 = vpop.f32.mrb[0].mxu0
        %v780 = vadd.f32 0.0, %v779
        %v781 = vpop.f32.mrb[0].mxu0
        %v782 = vadd.f32 0.0, %v781
        %783 = vmatprep.mubr.f32.mxu0 %v476
        %784 = vmatmul.mubr.f32.gmra.mrb[0].mxu0 %v475
        %v785 = vpop.f32.mrb[0].mxu0
        %v786 = vadd.f32 0.0, %v785
        %v787 = vpop.f32.mrb[0].mxu0
        %v788 = vadd.f32 0.0, %v787
        %789 = vmatprep.mubr.f32.mxu0 %v478
        %790 = vmatmul.mubr.f32.gmra.mrb[0].mxu0 %v477
        %v791 = vpop.f32.mrb[0].mxu0
        %v792 = vadd.f32 0.0, %v791
        %v793 = vpop.f32.mrb[0].mxu0
        %v794 = vadd.f32 0.0, %v793
        %795 = vmatprep.mubr.f32.mxu0 %v480
        %796 = vmatmul.mubr.f32.gmra.mrb[0].mxu0 %v479
        %v797 = vpop.f32.mrb[0].mxu0
        %v798 = vadd.f32 0.0, %v797
        %v799 = vpop.f32.mrb[0].mxu0
        %v800 = vadd.f32 0.0, %v799
        %801 = vdwg.mxu0
        %v802 = vadd.f32 %v353, %v612
        %v803 = vadd.f32 %v354, %v614
        %v804 = vadd.f32 %v355, %v618
        %v805 = vadd.f32 %v356, %v620
        %v806 = vadd.f32 %v357, %v624
        %v807 = vadd.f32 %v358, %v626
        %v808 = vadd.f32 %v359, %v630
        %v809 = vadd.f32 %v360, %v632
        %v810 = vadd.f32 %v361, %v636
        %v811 = vadd.f32 %v362, %v638
        %v812 = vadd.f32 %v363, %v642
        %v813 = vadd.f32 %v364, %v644
        %v814 = vadd.f32 %v365, %v648
        %v815 = vadd.f32 %v366, %v650
        %v816 = vadd.f32 %v367, %v654
        %v817 = vadd.f32 %v368, %v656
        %v818 = vadd.f32 %v369, %v660
        %v819 = vadd.f32 %v370, %v662
        %v820 = vadd.f32 %v371, %v666
        %v821 = vadd.f32 %v372, %v668
        %v822 = vadd.f32 %v373, %v672
        %v823 = vadd.f32 %v374, %v674
        %v824 = vadd.f32 %v375, %v678
        %v825 = vadd.f32 %v376, %v680
        %v826 = vadd.f32 %v377, %v684
        %v827 = vadd.f32 %v378, %v686
        %v828 = vadd.f32 %v379, %v690
        %v829 = vadd.f32 %v380, %v692
        %v830 = vadd.f32 %v381, %v696
        %v831 = vadd.f32 %v382, %v698
        %v832 = vadd.f32 %v383, %v702
        %v833 = vadd.f32 %v384, %v704
        %v834 = vadd.f32 %v385, %v708
        %v835 = vadd.f32 %v386, %v710
        %v836 = vadd.f32 %v387, %v714
        %v837 = vadd.f32 %v388, %v716
        %v838 = vadd.f32 %v389, %v720
        %v839 = vadd.f32 %v390, %v722
        %v840 = vadd.f32 %v391, %v726
        %v841 = vadd.f32 %v392, %v728
        %v842 = vadd.f32 %v393, %v732
        %v843 = vadd.f32 %v394, %v734
        %v844 = vadd.f32 %v395, %v738
        %v845 = vadd.f32 %v396, %v740
        %v846 = vadd.f32 %v397, %v744
        %v847 = vadd.f32 %v398, %v746
        %v848 = vadd.f32 %v399, %v750
        %v849 = vadd.f32 %v400, %v752
        %v850 = vadd.f32 %v401, %v756
        %v851 = vadd.f32 %v402, %v758
        %v852 = vadd.f32 %v403, %v762
        %v853 = vadd.f32 %v404, %v764
        %v854 = vadd.f32 %v405, %v768
        %v855 = vadd.f32 %v406, %v770
        %v856 = vadd.f32 %v407, %v774
        %v857 = vadd.f32 %v408, %v776
        %v858 = vadd.f32 %v409, %v780
        %v859 = vadd.f32 %v410, %v782
        %v860 = vadd.f32 %v411, %v786
        %v861 = vadd.f32 %v412, %v788
        %v862 = vadd.f32 %v413, %v792
        %v863 = vadd.f32 %v414, %v794
        %v864 = vadd.f32 %v415, %v798
        %v865 = vadd.f32 %v416, %v800
        %866 = vst [vmem:[#allocation2] sm:$0xff] %v802
        %867 = vst [vmem:[#allocation2 + $0x8] sm:$0xff] %v803
        %868 = vst [vmem:[#allocation2 + $0x10] sm:$0xff] %v804
        %869 = vst [vmem:[#allocation2 + $0x18] sm:$0xff] %v805
        %870 = vst [vmem:[#allocation2 + $0x20] sm:$0xff] %v806
        %871 = vst [vmem:[#allocation2 + $0x28] sm:$0xff] %v807
        %872 = vst [vmem:[#allocation2 + $0x30] sm:$0xff] %v808
        %873 = vst [vmem:[#allocation2 + $0x38] sm:$0xff] %v809
        %874 = vst [vmem:[#allocation2 + $0x40] sm:$0xff] %v810
        %875 = vst [vmem:[#allocation2 + $0x48] sm:$0xff] %v811
        %876 = vst [vmem:[#allocation2 + $0x50] sm:$0xff] %v812
        %877 = vst [vmem:[#allocation2 + $0x58] sm:$0xff] %v813
        %878 = vst [vmem:[#allocation2 + $0x60] sm:$0xff] %v814
        %879 = vst [vmem:[#allocation2 + $0x68] sm:$0xff] %v815
        %880 = vst [vmem:[#allocation2 + $0x70] sm:$0xff] %v816
        %881 = vst [vmem:[#allocation2 + $0x78] sm:$0xff] %v817
        %882 = vst [vmem:[#allocation2 + $0x80] sm:$0xff] %v818
        %883 = vst [vmem:[#allocation2 + $0x88] sm:$0xff] %v819
        %884 = vst [vmem:[#allocation2 + $0x90] sm:$0xff] %v820
        %885 = vst [vmem:[#allocation2 + $0x98] sm:$0xff] %v821
        %886 = vst [vmem:[#allocation2 + $0xa0] sm:$0xff] %v822
        %887 = vst [vmem:[#allocation2 + $0xa8] sm:$0xff] %v823
        %888 = vst [vmem:[#allocation2 + $0xb0] sm:$0xff] %v824
        %889 = vst [vmem:[#allocation2 + $0xb8] sm:$0xff] %v825
        %890 = vst [vmem:[#allocation2 + $0xc0] sm:$0xff] %v826
        %891 = vst [vmem:[#allocation2 + $0xc8] sm:$0xff] %v827
        %892 = vst [vmem:[#allocation2 + $0xd0] sm:$0xff] %v828
        %893 = vst [vmem:[#allocation2 + $0xd8] sm:$0xff] %v829
        %894 = vst [vmem:[#allocation2 + $0xe0] sm:$0xff] %v830
        %895 = vst [vmem:[#allocation2 + $0xe8] sm:$0xff] %v831
        %896 = vst [vmem:[#allocation2 + $0xf0] sm:$0xff] %v832
        %897 = vst [vmem:[#allocation2 + $0xf8] sm:$0xff] %v833
        %898 = vst [vmem:[#allocation2 + $0x100] sm:$0xff] %v834
        %899 = vst [vmem:[#allocation2 + $0x108] sm:$0xff] %v835
        %900 = vst [vmem:[#allocation2 + $0x110] sm:$0xff] %v836
        %901 = vst [vmem:[#allocation2 + $0x118] sm:$0xff] %v837
        %902 = vst [vmem:[#allocation2 + $0x120] sm:$0xff] %v838
        %903 = vst [vmem:[#allocation2 + $0x128] sm:$0xff] %v839
        %904 = vst [vmem:[#allocation2 + $0x130] sm:$0xff] %v840
        %905 = vst [vmem:[#allocation2 + $0x138] sm:$0xff] %v841
        %906 = vst [vmem:[#allocation2 + $0x140] sm:$0xff] %v842
        %907 = vst [vmem:[#allocation2 + $0x148] sm:$0xff] %v843
        %908 = vst [vmem:[#allocation2 + $0x150] sm:$0xff] %v844
        %909 = vst [vmem:[#allocation2 + $0x158] sm:$0xff] %v845
        %910 = vst [vmem:[#allocation2 + $0x160] sm:$0xff] %v846
        %911 = vst [vmem:[#allocation2 + $0x168] sm:$0xff] %v847
        %912 = vst [vmem:[#allocation2 + $0x170] sm:$0xff] %v848
        %913 = vst [vmem:[#allocation2 + $0x178] sm:$0xff] %v849
        %914 = vst [vmem:[#allocation2 + $0x180] sm:$0xff] %v850
        %915 = vst [vmem:[#allocation2 + $0x188] sm:$0xff] %v851
        %916 = vst [vmem:[#allocation2 + $0x190] sm:$0xff] %v852
        %917 = vst [vmem:[#allocation2 + $0x198] sm:$0xff] %v853
        %918 = vst [vmem:[#allocation2 + $0x1a0] sm:$0xff] %v854
        %919 = vst [vmem:[#allocation2 + $0x1a8] sm:$0xff] %v855
        %920 = vst [vmem:[#allocation2 + $0x1b0] sm:$0xff] %v856
        %921 = vst [vmem:[#allocation2 + $0x1b8] sm:$0xff] %v857
        %922 = vst [vmem:[#allocation2 + $0x1c0] sm:$0xff] %v858
        %923 = vst [vmem:[#allocation2 + $0x1c8] sm:$0xff] %v859
        %924 = vst [vmem:[#allocation2 + $0x1d0] sm:$0xff] %v860
        %925 = vst [vmem:[#allocation2 + $0x1d8] sm:$0xff] %v861
        %926 = vst [vmem:[#allocation2 + $0x1e0] sm:$0xff] %v862
        %927 = vst [vmem:[#allocation2 + $0x1e8] sm:$0xff] %v863
        %928 = vst [vmem:[#allocation2 + $0x1f0] sm:$0xff] %v864
        %929 = vst [vmem:[#allocation2 + $0x1f8] sm:$0xff] %v865
        // Predicated region
        $region49: #{tpu_custom_call.1} parent=31 // pred_check
          %p930 = pneg %p285
        $region50: #{tpu_custom_call.1} parent=31 // pred_check_branch
          %932 = sbr.rel (%p930) target = $region52
        $region51: #{tpu_custom_call.1} parent=31 // pred_region
          %v933 = vld [vmem:[#allocation2] sm:$0xff]
          %v934 = vld [vmem:[#allocation2 + $0x8] sm:$0xff]
          %v935 = vld [vmem:[#allocation2 + $0x10] sm:$0xff]
          %v936 = vld [vmem:[#allocation2 + $0x18] sm:$0xff]
          %v937 = vld [vmem:[#allocation2 + $0x20] sm:$0xff]
          %v938 = vld [vmem:[#allocation2 + $0x28] sm:$0xff]
          %v939 = vld [vmem:[#allocation2 + $0x30] sm:$0xff]
          %v940 = vld [vmem:[#allocation2 + $0x38] sm:$0xff]
          %v941 = vld [vmem:[#allocation2 + $0x40] sm:$0xff]
          %v942 = vld [vmem:[#allocation2 + $0x48] sm:$0xff]
          %v943 = vld [vmem:[#allocation2 + $0x50] sm:$0xff]
          %v944 = vld [vmem:[#allocation2 + $0x58] sm:$0xff]
          %v945 = vld [vmem:[#allocation2 + $0x60] sm:$0xff]
          %v946 = vld [vmem:[#allocation2 + $0x68] sm:$0xff]
          %v947 = vld [vmem:[#allocation2 + $0x70] sm:$0xff]
          %v948 = vld [vmem:[#allocation2 + $0x78] sm:$0xff]
          %v949 = vld [vmem:[#allocation2 + $0x80] sm:$0xff]
          %v950 = vld [vmem:[#allocation2 + $0x88] sm:$0xff]
          %v951 = vld [vmem:[#allocation2 + $0x90] sm:$0xff]
          %v952 = vld [vmem:[#allocation2 + $0x98] sm:$0xff]
          %v953 = vld [vmem:[#allocation2 + $0xa0] sm:$0xff]
          %v954 = vld [vmem:[#allocation2 + $0xa8] sm:$0xff]
          %v955 = vld [vmem:[#allocation2 + $0xb0] sm:$0xff]
          %v956 = vld [vmem:[#allocation2 + $0xb8] sm:$0xff]
          %v957 = vld [vmem:[#allocation2 + $0xc0] sm:$0xff]
          %v958 = vld [vmem:[#allocation2 + $0xc8] sm:$0xff]
          %v959 = vld [vmem:[#allocation2 + $0xd0] sm:$0xff]
          %v960 = vld [vmem:[#allocation2 + $0xd8] sm:$0xff]
          %v961 = vld [vmem:[#allocation2 + $0xe0] sm:$0xff]
          %v962 = vld [vmem:[#allocation2 + $0xe8] sm:$0xff]
          %v963 = vld [vmem:[#allocation2 + $0xf0] sm:$0xff]
          %v964 = vld [vmem:[#allocation2 + $0xf8] sm:$0xff]
          %v965 = vld [vmem:[#allocation2 + $0x100] sm:$0xff]
          %v966 = vld [vmem:[#allocation2 + $0x108] sm:$0xff]
          %v967 = vld [vmem:[#allocation2 + $0x110] sm:$0xff]
          %v968 = vld [vmem:[#allocation2 + $0x118] sm:$0xff]
          %v969 = vld [vmem:[#allocation2 + $0x120] sm:$0xff]
          %v970 = vld [vmem:[#allocation2 + $0x128] sm:$0xff]
          %v971 = vld [vmem:[#allocation2 + $0x130] sm:$0xff]
          %v972 = vld [vmem:[#allocation2 + $0x138] sm:$0xff]
          %v973 = vld [vmem:[#allocation2 + $0x140] sm:$0xff]
          %v974 = vld [vmem:[#allocation2 + $0x148] sm:$0xff]
          %v975 = vld [vmem:[#allocation2 + $0x150] sm:$0xff]
          %v976 = vld [vmem:[#allocation2 + $0x158] sm:$0xff]
          %v977 = vld [vmem:[#allocation2 + $0x160] sm:$0xff]
          %v978 = vld [vmem:[#allocation2 + $0x168] sm:$0xff]
          %v979 = vld [vmem:[#allocation2 + $0x170] sm:$0xff]
          %v980 = vld [vmem:[#allocation2 + $0x178] sm:$0xff]
          %v981 = vld [vmem:[#allocation2 + $0x180] sm:$0xff]
          %v982 = vld [vmem:[#allocation2 + $0x188] sm:$0xff]
          %v983 = vld [vmem:[#allocation2 + $0x190] sm:$0xff]
          %v984 = vld [vmem:[#allocation2 + $0x198] sm:$0xff]
          %v985 = vld [vmem:[#allocation2 + $0x1a0] sm:$0xff]
          %v986 = vld [vmem:[#allocation2 + $0x1a8] sm:$0xff]
          %v987 = vld [vmem:[#allocation2 + $0x1b0] sm:$0xff]
          %v988 = vld [vmem:[#allocation2 + $0x1b8] sm:$0xff]
          %v989 = vld [vmem:[#allocation2 + $0x1c0] sm:$0xff]
          %v990 = vld [vmem:[#allocation2 + $0x1c8] sm:$0xff]
          %v991 = vld [vmem:[#allocation2 + $0x1d0] sm:$0xff]
          %v992 = vld [vmem:[#allocation2 + $0x1d8] sm:$0xff]
          %v993 = vld [vmem:[#allocation2 + $0x1e0] sm:$0xff]
          %v994 = vld [vmem:[#allocation2 + $0x1e8] sm:$0xff]
          %v995 = vld [vmem:[#allocation2 + $0x1f0] sm:$0xff]
          %v996 = vld [vmem:[#allocation2 + $0x1f8] sm:$0xff]
          %v997 = vld [vmem:[%s250] sm:$0x3]
          %v999 = vlaneseq
          %v1000 = vshrl.u32 %v999, 7
          %v1001 = vsub.s32 0, %v1000
          %v1002 = vrot.slane %v997, %v1001
          %v1003 = vlaneseq
          %v1004 = vshrl.u32 %v1003, 7
          %v1005 = vsub.s32 1, %v1004
          %v1006 = vrot.slane %v997, %v1005
          %v1009 = vadd.f32 %v933, %v1002
          %v1010 = vadd.f32 %v934, %v1006
          %v1011 = vadd.f32 %v935, %v1002
          %v1012 = vadd.f32 %v936, %v1006
          %v1013 = vadd.f32 %v937, %v1002
          %v1014 = vadd.f32 %v938, %v1006
          %v1015 = vadd.f32 %v939, %v1002
          %v1016 = vadd.f32 %v940, %v1006
          %v1017 = vadd.f32 %v941, %v1002
          %v1018 = vadd.f32 %v942, %v1006
          %v1019 = vadd.f32 %v943, %v1002
          %v1020 = vadd.f32 %v944, %v1006
          %v1021 = vadd.f32 %v945, %v1002
          %v1022 = vadd.f32 %v946, %v1006
          %v1023 = vadd.f32 %v947, %v1002
          %v1024 = vadd.f32 %v948, %v1006
          %v1025 = vadd.f32 %v949, %v1002
          %v1026 = vadd.f32 %v950, %v1006
          %v1027 = vadd.f32 %v951, %v1002
          %v1028 = vadd.f32 %v952, %v1006
          %v1029 = vadd.f32 %v953, %v1002
          %v1030 = vadd.f32 %v954, %v1006
          %v1031 = vadd.f32 %v955, %v1002
          %v1032 = vadd.f32 %v956, %v1006
          %v1033 = vadd.f32 %v957, %v1002
          %v1034 = vadd.f32 %v958, %v1006
          %v1035 = vadd.f32 %v959, %v1002
          %v1036 = vadd.f32 %v960, %v1006
          %v1037 = vadd.f32 %v961, %v1002
          %v1038 = vadd.f32 %v962, %v1006
          %v1039 = vadd.f32 %v963, %v1002
          %v1040 = vadd.f32 %v964, %v1006
          %v1041 = vadd.f32 %v965, %v1002
          %v1042 = vadd.f32 %v966, %v1006
          %v1043 = vadd.f32 %v967, %v1002
          %v1044 = vadd.f32 %v968, %v1006
          %v1045 = vadd.f32 %v969, %v1002
          %v1046 = vadd.f32 %v970, %v1006
          %v1047 = vadd.f32 %v971, %v1002
          %v1048 = vadd.f32 %v972, %v1006
          %v1049 = vadd.f32 %v973, %v1002
          %v1050 = vadd.f32 %v974, %v1006
          %v1051 = vadd.f32 %v975, %v1002
          %v1052 = vadd.f32 %v976, %v1006
          %v1053 = vadd.f32 %v977, %v1002
          %v1054 = vadd.f32 %v978, %v1006
          %v1055 = vadd.f32 %v979, %v1002
          %v1056 = vadd.f32 %v980, %v1006
          %v1057 = vadd.f32 %v981, %v1002
          %v1058 = vadd.f32 %v982, %v1006
          %v1059 = vadd.f32 %v983, %v1002
          %v1060 = vadd.f32 %v984, %v1006
          %v1061 = vadd.f32 %v985, %v1002
          %v1062 = vadd.f32 %v986, %v1006
          %v1063 = vadd.f32 %v987, %v1002
          %v1064 = vadd.f32 %v988, %v1006
          %v1065 = vadd.f32 %v989, %v1002
          %v1066 = vadd.f32 %v990, %v1006
          %v1067 = vadd.f32 %v991, %v1002
          %v1068 = vadd.f32 %v992, %v1006
          %v1069 = vadd.f32 %v993, %v1002
          %v1070 = vadd.f32 %v994, %v1006
          %v1071 = vadd.f32 %v995, %v1002
          %v1072 = vadd.f32 %v996, %v1006
          %1073 = vst [vmem:[%s277] sm:$0xff] %v1009
          %1074 = vst [vmem:[%s277 + $0x8] sm:$0xff] %v1010
          %1075 = vst [vmem:[%s277 + $0x10] sm:$0xff] %v1011
          %1076 = vst [vmem:[%s277 + $0x18] sm:$0xff] %v1012
          %1077 = vst [vmem:[%s277 + $0x20] sm:$0xff] %v1013
          %1078 = vst [vmem:[%s277 + $0x28] sm:$0xff] %v1014
          %1079 = vst [vmem:[%s277 + $0x30] sm:$0xff] %v1015
          %1080 = vst [vmem:[%s277 + $0x38] sm:$0xff] %v1016
          %1081 = vst [vmem:[%s277 + $0x40] sm:$0xff] %v1017
          %1082 = vst [vmem:[%s277 + $0x48] sm:$0xff] %v1018
          %1083 = vst [vmem:[%s277 + $0x50] sm:$0xff] %v1019
          %1084 = vst [vmem:[%s277 + $0x58] sm:$0xff] %v1020
          %1085 = vst [vmem:[%s277 + $0x60] sm:$0xff] %v1021
          %1086 = vst [vmem:[%s277 + $0x68] sm:$0xff] %v1022
          %1087 = vst [vmem:[%s277 + $0x70] sm:$0xff] %v1023
          %1088 = vst [vmem:[%s277 + $0x78] sm:$0xff] %v1024
          %1089 = vst [vmem:[%s277 + $0x80] sm:$0xff] %v1025
          %1090 = vst [vmem:[%s277 + $0x88] sm:$0xff] %v1026
          %1091 = vst [vmem:[%s277 + $0x90] sm:$0xff] %v1027
          %1092 = vst [vmem:[%s277 + $0x98] sm:$0xff] %v1028
          %1093 = vst [vmem:[%s277 + $0xa0] sm:$0xff] %v1029
          %1094 = vst [vmem:[%s277 + $0xa8] sm:$0xff] %v1030
          %1095 = vst [vmem:[%s277 + $0xb0] sm:$0xff] %v1031
          %1096 = vst [vmem:[%s277 + $0xb8] sm:$0xff] %v1032
          %1097 = vst [vmem:[%s277 + $0xc0] sm:$0xff] %v1033
          %1098 = vst [vmem:[%s277 + $0xc8] sm:$0xff] %v1034
          %1099 = vst [vmem:[%s277 + $0xd0] sm:$0xff] %v1035
          %1100 = vst [vmem:[%s277 + $0xd8] sm:$0xff] %v1036
          %1101 = vst [vmem:[%s277 + $0xe0] sm:$0xff] %v1037
          %1102 = vst [vmem:[%s277 + $0xe8] sm:$0xff] %v1038
          %1103 = vst [vmem:[%s277 + $0xf0] sm:$0xff] %v1039
          %1104 = vst [vmem:[%s277 + $0xf8] sm:$0xff] %v1040
          %1105 = vst [vmem:[%s277 + $0x100] sm:$0xff] %v1041
          %1106 = vst [vmem:[%s277 + $0x108] sm:$0xff] %v1042
          %1107 = vst [vmem:[%s277 + $0x110] sm:$0xff] %v1043
          %1108 = vst [vmem:[%s277 + $0x118] sm:$0xff] %v1044
          %1109 = vst [vmem:[%s277 + $0x120] sm:$0xff] %v1045
          %1110 = vst [vmem:[%s277 + $0x128] sm:$0xff] %v1046
          %1111 = vst [vmem:[%s277 + $0x130] sm:$0xff] %v1047
          %1112 = vst [vmem:[%s277 + $0x138] sm:$0xff] %v1048
          %1113 = vst [vmem:[%s277 + $0x140] sm:$0xff] %v1049
          %1114 = vst [vmem:[%s277 + $0x148] sm:$0xff] %v1050
          %1115 = vst [vmem:[%s277 + $0x150] sm:$0xff] %v1051
          %1116 = vst [vmem:[%s277 + $0x158] sm:$0xff] %v1052
          %1117 = vst [vmem:[%s277 + $0x160] sm:$0xff] %v1053
          %1118 = vst [vmem:[%s277 + $0x168] sm:$0xff] %v1054
          %1119 = vst [vmem:[%s277 + $0x170] sm:$0xff] %v1055
          %1120 = vst [vmem:[%s277 + $0x178] sm:$0xff] %v1056
          %1121 = vst [vmem:[%s277 + $0x180] sm:$0xff] %v1057
          %1122 = vst [vmem:[%s277 + $0x188] sm:$0xff] %v1058
          %1123 = vst [vmem:[%s277 + $0x190] sm:$0xff] %v1059
          %1124 = vst [vmem:[%s277 + $0x198] sm:$0xff] %v1060
          %1125 = vst [vmem:[%s277 + $0x1a0] sm:$0xff] %v1061
          %1126 = vst [vmem:[%s277 + $0x1a8] sm:$0xff] %v1062
          %1127 = vst [vmem:[%s277 + $0x1b0] sm:$0xff] %v1063
          %1128 = vst [vmem:[%s277 + $0x1b8] sm:$0xff] %v1064
          %1129 = vst [vmem:[%s277 + $0x1c0] sm:$0xff] %v1065
          %1130 = vst [vmem:[%s277 + $0x1c8] sm:$0xff] %v1066
          %1131 = vst [vmem:[%s277 + $0x1d0] sm:$0xff] %v1067
          %1132 = vst [vmem:[%s277 + $0x1d8] sm:$0xff] %v1068
          %1133 = vst [vmem:[%s277 + $0x1e0] sm:$0xff] %v1069
          %1134 = vst [vmem:[%s277 + $0x1e8] sm:$0xff] %v1070
          %1135 = vst [vmem:[%s277 + $0x1f0] sm:$0xff] %v1071
          %1136 = vst [vmem:[%s277 + $0x1f8] sm:$0xff] %v1072
        $region52: #{tpu_custom_call.1} parent=31 // pred_fallthru
          _
        %s1137 = sand.u32 %s132, 1
        %s1138 = scalar_lea.sflag [#allocation5], %s1137
        %s1139 = sand.u32 %s132, 1
        %s1140 = smul.addr %s1139, 512
        %s1141 = scalar_lea.vmem [#allocation9], %s1140
        // Predicated region
        $region53: #{tpu_custom_call.1} parent=31 // pred_check
          %p1142 = pneg %p142
        $region54: #{tpu_custom_call.1} parent=31 // pred_check_branch
          %1144 = sbr.rel (%p1142) target = $region56
        $region55: #{tpu_custom_call.1} parent=31 // pred_region
          %s1145 = smul.u32 32, %s26
          %s1146 = smul.u32 2, %s27
          %s1148 = ssub.s32 8192, 8192
          %1149 = vsyncadd %s1138, %s1148
          %s1150 = smul.addr %s1145, 6
          %s1151 = sadd.s32 %s1146, %s1150
          %s1152 = smul.addr %s1151, 128
          %s1153 = scalar_lea.hbm %s3, %s1152
          %s1154 = sshll.u32 %s1141, 4
          %s1155 = int_to_ptr.vmem [resolvable:$true] %s1154
          %1160 = dma.vmem_to_hbm [thread:$0]  %s1155, 8192, %s1153, %s1138, 256, 768, 16
        $region56: #{tpu_custom_call.1} parent=31 // pred_fallthru
          _
      $region32: #{tpu_custom_call.1} parent=5 // pred_fallthru
        _
      %p1161 = scmp.le.s32.totalorder 2, %s16
      // Predicated region
      $region57: #{tpu_custom_call.1} parent=5 // pred_check
        %p1162 = pneg %p1161
      $region58: #{tpu_custom_call.1} parent=5 // pred_check_branch
        %1164 = sbr.rel (%p1162) target = $region60
      $region59: #{tpu_custom_call.1} parent=5 // pred_region
        %s1165 = ssub.s32 %s16, 2
        // Predicated region
        $region61: #{tpu_custom_call.1} parent=59 // pred_check
          %p1166 = pneg %p148
        $region62: #{tpu_custom_call.1} parent=59 // pred_check_branch
          %1168 = sbr.rel (%p1166) target = $region64
        $region63: #{tpu_custom_call.1} parent=59 // pred_region
          %s1169 = sand.u32 %s133, 1
          %s1170 = scalar_lea.sflag [#allocation5], %s1169
          %s1171 = sand.u32 %s133, 1
          %s1172 = smul.addr %s1171, 512
          %s1173 = scalar_lea.vmem [#allocation9], %s1172
          %1174 = dma.done %s1170, 8192
        $region64: #{tpu_custom_call.1} parent=59 // pred_fallthru
          _
      $region60: #{tpu_custom_call.1} parent=5 // pred_fallthru
        _
    $region6: #{tpu_custom_call.1} parent=1 // loop_footer
      %s20 = sadd.s32 1, %s16
    $region7: #{tpu_custom_call.1} parent=1 // loop_footer_branch
      %15 = sbr.rel target = $region3
    $region8: #{tpu_custom_call.1} parent=1 // loop_exit
      _
    %1175 = vsyncpa [#allocation4], 1
    %s1176 = scalar_lea.sflag [#allocation4], 1
    %1177 = vsyncpa %s1176, 1
    %1178 = vsyncpa [#allocation7], 1
    %s1179 = scalar_lea.sflag [#allocation7], 1
    %1180 = vsyncpa %s1179, 1
    %1181 = vsyncpa [#allocation5], 1
    %s1182 = scalar_lea.sflag [#allocation5], 1
    %1183 = vsyncpa %s1182, 1

</llo_original>
